<compile_context>
chip_gen: v7x
topology: tpu7x:2x2x1
jax: 0.10.0
libtpu: 0.0.40
codegen_flags: <defaults>
</compile_context>

<pallas_src>
import functools

import jax
import jax.numpy as jnp
from jax.experimental import pallas as pl
from jax.experimental.pallas import tpu as pltpu  # noqa: F401  (kept for TPU-specific tuning hooks)


# ---------------------------------------------------------------------------
# Pallas kernels
# ---------------------------------------------------------------------------
def _matmul_bias_act_kernel(w_ref, p_ref, b_ref, o_ref, *, act):
    # (N, K) @ (K, M) on the MXU with f32 accumulation; bias + activation are
    # fused in the epilogue (ReLU on the VPU, tanh on the EUP -> ~free slots).
    acc = jnp.dot(w_ref[...], p_ref[...], preferred_element_type=jnp.float32)
    acc = acc + b_ref[...]
    if act == "relu":
        acc = jnp.maximum(acc, 0.0)
    elif act == "tanh":
        acc = jnp.tanh(acc)
    o_ref[...] = acc.astype(o_ref.dtype)


def matmul_bias_act(w, pat, b, act="none"):
    """act(w @ pat + b[:, None]) in one Pallas TPU kernel.

    w: (N, K) float32, pat: (K, M) float32, b: (N,) float32 -> (N, M) float32.
    Full-array blocks (no host padding); MXU inputs fed as bf16.
    """
    N, K = w.shape
    M = pat.shape[1]
    return pl.pallas_call(
        functools.partial(_matmul_bias_act_kernel, act=act),
        out_shape=jax.ShapeDtypeStruct((N, M), jnp.float32),
    )(
        w.astype(jnp.bfloat16),
        pat.astype(jnp.bfloat16),
        b.astype(jnp.float32).reshape(N, 1),
    )


def _max_views_kernel(*refs):
    # Elementwise max of the k*k shifted views (VPU), lane-dense output.
    *in_refs, o_ref = refs
    acc = in_refs[0][...]
    for r in in_refs[1:]:
        acc = jnp.maximum(acc, r[...])
    o_ref[...] = acc


# ---------------------------------------------------------------------------
# Conv / pool / conv-transpose built on the Pallas kernels (thin JAX glue)
# Internal activation layout: (C, B, H, W)  ("CBHW", channels-first).
# ---------------------------------------------------------------------------
def _im2col_cbhw(x, kh, kw, stride):
    """x: (C, B, H, W) already padded -> (C*kh*kw, B*Ho*Wo), Ho, Wo."""
    C, B, H, W = x.shape
    Ho = (H - kh) // stride + 1
    Wo = (W - kw) // stride + 1
    taps = []
    for i in range(kh):
        for j in range(kw):
            taps.append(
                x[:, :, i : i + (Ho - 1) * stride + 1 : stride,
                        j : j + (Wo - 1) * stride + 1 : stride]
            )
    pat = jnp.stack(taps, axis=1)  # (C, kh*kw, B, Ho, Wo) -> rows (ci, i, j)
    return pat.reshape(C * kh * kw, B * Ho * Wo), Ho, Wo


def conv2d_cbhw(x, w, b, stride, padding, act):
    """PyTorch-semantics Conv2d. x: (Cin,B,H,W); w: (Cout,Cin,kh,kw); b: (Cout,)."""
    Cout, Cin, kh, kw = w.shape
    _, B, H, W = x.shape
    xp = jnp.pad(x, ((0, 0), (0, 0), (padding, padding), (padding, padding)))
    pat, Ho, Wo = _im2col_cbhw(xp, kh, kw, stride)
    wmat = w.reshape(Cout, Cin * kh * kw)      # matches pat row ordering
    out = matmul_bias_act(wmat, pat, b, act)   # (Cout, B*Ho*Wo) lane-dense
    return out.reshape(Cout, B, Ho, Wo)


def maxpool2d_cbhw(x, k, stride):
    """PyTorch-semantics MaxPool2d(kernel=k, stride=stride), no padding."""
    C, B, H, W = x.shape
    Ho = (H - k) // stride + 1
    Wo = (W - k) // stride + 1
    n = C * B * Ho * Wo
    views = []
    for i in range(k):
        for j in range(k):
            v = x[:, :, i : i + (Ho - 1) * stride + 1 : stride,
                        j : j + (Wo - 1) * stride + 1 : stride]
            views.append(v.reshape(1, n))      # lane-dense flattened view
    out = pl.pallas_call(
        _max_views_kernel,
        out_shape=jax.ShapeDtypeStruct((1, n), jnp.float32),
    )(*views)
    return out.reshape(C, B, Ho, Wo)


def conv_transpose2d_cbhw(x, w, b, stride, padding, act):
    """PyTorch-semantics ConvTranspose2d. x: (Cin,B,H,W); w: (Cin,Cout,kh,kw)."""
    Cin, Cout, kh, kw = w.shape
    _, B, H, W = x.shape
    # Guard the latent hazard flagged in review (not hit by this model).
    assert padding <= kh - 1 and padding <= kw - 1
    # Dilate input by stride, pad by (k-1-padding), stride-1 conv with flipped w.
    Hd = (H - 1) * stride + 1
    Wd = (W - 1) * stride + 1
    xd = jnp.zeros((Cin, B, Hd, Wd), x.dtype).at[:, :, ::stride, ::stride].set(x)
    ph, pw = kh - 1 - padding, kw - 1 - padding
    xp = jnp.pad(xd, ((0, 0), (0, 0), (ph, ph), (pw, pw)))
    w_eq = jnp.transpose(jnp.flip(w, axis=(2, 3)), (1, 0, 2, 3))  # (Cout,Cin,kh,kw)
    return conv2d_cbhw(xp, w_eq, b, stride=1, padding=0, act=act)


# ---------------------------------------------------------------------------
# CAE parameters and forward
# ---------------------------------------------------------------------------
def init_cae_params(key, input_ch=1):
    def _w(key, shape, fan_in):
        bound = 1.0 / jnp.sqrt(fan_in)
        return jax.random.uniform(key, shape, jnp.float32, -bound, bound)

    keys = jax.random.split(key, 10)
    p = {}
    # Encoder: Conv2d(input_ch,16,3,s=3,p=1), Conv2d(16,8,3,s=2,p=1)
    p["e1_w"] = _w(keys[0], (16, input_ch, 3, 3), input_ch * 9)
    p["e1_b"] = _w(keys[1], (16,), input_ch * 9)
    p["e2_w"] = _w(keys[2], (8, 16, 3, 3), 16 * 9)
    p["e2_b"] = _w(keys[3], (8,), 16 * 9)
    # Decoder: ConvT(8,16,3,s=2), ConvT(16,8,5,s=3,p=1), ConvT(8,1,2,s=2,p=1)
    p["d1_w"] = _w(keys[4], (8, 16, 3, 3), 8 * 9)
    p["d1_b"] = _w(keys[5], (16,), 8 * 9)
    p["d2_w"] = _w(keys[6], (16, 8, 5, 5), 16 * 25)
    p["d2_b"] = _w(keys[7], (8,), 16 * 25)
    p["d3_w"] = _w(keys[8], (8, 1, 2, 2), 8 * 4)
    p["d3_b"] = _w(keys[9], (1,), 8 * 4)
    return p


def cae_forward(params, x_nchw):
    # NCHW -> CBHW (channels-first internal layout)
    x = jnp.transpose(x_nchw.astype(jnp.float32), (1, 0, 2, 3))

    # Encoder
    x = conv2d_cbhw(x, params["e1_w"], params["e1_b"], stride=3, padding=1, act="relu")
    x = maxpool2d_cbhw(x, k=2, stride=2)
    x = conv2d_cbhw(x, params["e2_w"], params["e2_b"], stride=2, padding=1, act="relu")
    x = maxpool2d_cbhw(x, k=2, stride=1)

    # Decoder
    x = conv_transpose2d_cbhw(x, params["d1_w"], params["d1_b"], stride=2, padding=0, act="relu")
    x = conv_transpose2d_cbhw(x, params["d2_w"], params["d2_b"], stride=3, padding=1, act="relu")
    x = conv_transpose2d_cbhw(x, params["d3_w"], params["d3_b"], stride=2, padding=1, act="tanh")

    # CBHW -> NCHW
    return jnp.transpose(x, (1, 0, 2, 3))


if __name__ == "__main__":
    key = jax.random.PRNGKey(0)
    k_param, k_input = jax.random.split(key)

    input_ch = 1
    params = init_cae_params(k_param, input_ch=input_ch)
    # MNIST-like input: batch=2, 1 channel, 28x28 (NCHW, as in PyTorch)
    x = jax.random.normal(k_input, (2, input_ch, 28, 28), jnp.float32)

    out = jax.jit(cae_forward)(params, x)
    out = jax.block_until_ready(out)

    assert out.shape == (2, 1, 28, 28), out.shape
    assert bool(jnp.all(jnp.isfinite(out)))
    assert bool(jnp.all(jnp.abs(out) <= 1.0 + 1e-6))  # tanh output range
    print("KERNEL_OK")
</pallas_src>

<mosaic_0001>
module attributes {stable_mosaic.version = 11 : i64} {
  func.func @_matmul_bias_act_kernel(%arg0: memref<16x9xbf16, #tpu.memory_space<vmem>>, %arg1: memref<9x200xbf16, #tpu.memory_space<vmem>>, %arg2: memref<16x1xf32, #tpu.memory_space<vmem>>, %arg3: memref<16x200xf32, #tpu.memory_space<vmem>>) attributes {dimension_semantics = [], scalar_prefetch = 0 : i64, scratch_operands = 0 : i64, tpu.core_type = #tpu.core_type<tc>} {
    %c0 = arith.constant 0 : index
    %c0_0 = arith.constant 0 : index
    %0 = vector.load %arg0[%c0, %c0_0] : memref<16x9xbf16, #tpu.memory_space<vmem>>, vector<16x9xbf16>
    %c0_1 = arith.constant 0 : index
    %c0_2 = arith.constant 0 : index
    %1 = vector.load %arg1[%c0_1, %c0_2] : memref<9x200xbf16, #tpu.memory_space<vmem>>, vector<9x200xbf16>
    %cst = arith.constant dense<0.000000e+00> : vector<16x200xf32>
    %2 = tpu.matmul %0, %1, %cst {dimension_numbers = #tpu.dot_dimension_numbers<[1], [0], [0], [1], [0, 0, 1, 1], [], []>} : vector<16x9xbf16>, vector<9x200xbf16>, vector<16x200xf32> -> vector<16x200xf32>
    %c0_3 = arith.constant 0 : index
    %c0_4 = arith.constant 0 : index
    %3 = vector.load %arg2[%c0_3, %c0_4] : memref<16x1xf32, #tpu.memory_space<vmem>>, vector<16x1xf32>
    %4 = vector.broadcast %3 : vector<16x1xf32> to vector<16x200xf32>
    %5 = arith.addf %2, %4 : vector<16x200xf32>
    %cst_5 = arith.constant 0.000000e+00 : f32
    %6 = vector.broadcast %cst_5 : f32 to vector<16x200xf32>
    %7 = arith.maximumf %5, %6 : vector<16x200xf32>
    %c0_6 = arith.constant 0 : index
    %c0_7 = arith.constant 0 : index
    %8 = vector.load %arg3[%c0_6, %c0_7] : memref<16x200xf32, #tpu.memory_space<vmem>>, vector<16x200xf32>
    tpu.vector_store %arg3[%c0_6, %c0_7], %7 {strides = array<i32>} : memref<16x200xf32, #tpu.memory_space<vmem>>, vector<16x200xf32>,
    return
  }
}

module attributes {stable_mosaic.version = 11 : i64} {
  func.func @_max_views_kernel(%arg0: memref<1x800xf32, #tpu.memory_space<vmem>>, %arg1: memref<1x800xf32, #tpu.memory_space<vmem>>, %arg2: memref<1x800xf32, #tpu.memory_space<vmem>>, %arg3: memref<1x800xf32, #tpu.memory_space<vmem>>, %arg4: memref<1x800xf32, #tpu.memory_space<vmem>>) attributes {dimension_semantics = [], scalar_prefetch = 0 : i64, scratch_operands = 0 : i64, tpu.core_type = #tpu.core_type<tc>} {
    %c0 = arith.constant 0 : index
    %c0_0 = arith.constant 0 : index
    %0 = vector.load %arg0[%c0, %c0_0] : memref<1x800xf32, #tpu.memory_space<vmem>>, vector<1x800xf32>
    %c0_1 = arith.constant 0 : index
    %c0_2 = arith.constant 0 : index
    %1 = vector.load %arg1[%c0_1, %c0_2] : memref<1x800xf32, #tpu.memory_space<vmem>>, vector<1x800xf32>
    %2 = arith.maximumf %0, %1 : vector<1x800xf32>
    %c0_3 = arith.constant 0 : index
    %c0_4 = arith.constant 0 : index
    %3 = vector.load %arg2[%c0_3, %c0_4] : memref<1x800xf32, #tpu.memory_space<vmem>>, vector<1x800xf32>
    %4 = arith.maximumf %2, %3 : vector<1x800xf32>
    %c0_5 = arith.constant 0 : index
    %c0_6 = arith.constant 0 : index
    %5 = vector.load %arg3[%c0_5, %c0_6] : memref<1x800xf32, #tpu.memory_space<vmem>>, vector<1x800xf32>
    %6 = arith.maximumf %4, %5 : vector<1x800xf32>
    %c0_7 = arith.constant 0 : index
    %c0_8 = arith.constant 0 : index
    %7 = vector.load %arg4[%c0_7, %c0_8] : memref<1x800xf32, #tpu.memory_space<vmem>>, vector<1x800xf32>
    tpu.vector_store %arg4[%c0_7, %c0_8], %6 {strides = array<i32>} : memref<1x800xf32, #tpu.memory_space<vmem>>, vector<1x800xf32>,
    return
  }
}

module attributes {stable_mosaic.version = 11 : i64} {
  func.func @_matmul_bias_act_kernel(%arg0: memref<8x144xbf16, #tpu.memory_space<vmem>>, %arg1: memref<144x18xbf16, #tpu.memory_space<vmem>>, %arg2: memref<8x1xf32, #tpu.memory_space<vmem>>, %arg3: memref<8x18xf32, #tpu.memory_space<vmem>>) attributes {dimension_semantics = [], scalar_prefetch = 0 : i64, scratch_operands = 0 : i64, tpu.core_type = #tpu.core_type<tc>} {
    %c0 = arith.constant 0 : index
    %c0_0 = arith.constant 0 : index
    %0 = vector.load %arg0[%c0, %c0_0] : memref<8x144xbf16, #tpu.memory_space<vmem>>, vector<8x144xbf16>
    %c0_1 = arith.constant 0 : index
    %c0_2 = arith.constant 0 : index
    %1 = vector.load %arg1[%c0_1, %c0_2] : memref<144x18xbf16, #tpu.memory_space<vmem>>, vector<144x18xbf16>
    %cst = arith.constant dense<0.000000e+00> : vector<8x18xf32>
    %2 = tpu.matmul %0, %1, %cst {dimension_numbers = #tpu.dot_dimension_numbers<[1], [0], [0], [1], [0, 0, 1, 1], [], []>} : vector<8x144xbf16>, vector<144x18xbf16>, vector<8x18xf32> -> vector<8x18xf32>
    %c0_3 = arith.constant 0 : index
    %c0_4 = arith.constant 0 : index
    %3 = vector.load %arg2[%c0_3, %c0_4] : memref<8x1xf32, #tpu.memory_space<vmem>>, vector<8x1xf32>
    %4 = vector.broadcast %3 : vector<8x1xf32> to vector<8x18xf32>
    %5 = arith.addf %2, %4 : vector<8x18xf32>
    %cst_5 = arith.constant 0.000000e+00 : f32
    %6 = vector.broadcast %cst_5 : f32 to vector<8x18xf32>
    %7 = arith.maximumf %5, %6 : vector<8x18xf32>
    %c0_6 = arith.constant 0 : index
    %c0_7 = arith.constant 0 : index
    %8 = vector.load %arg3[%c0_6, %c0_7] : memref<8x18xf32, #tpu.memory_space<vmem>>, vector<8x18xf32>
    tpu.vector_store %arg3[%c0_6, %c0_7], %7 {strides = array<i32>} : memref<8x18xf32, #tpu.memory_space<vmem>>, vector<8x18xf32>,
    return
  }
}

module attributes {stable_mosaic.version = 11 : i64} {
  func.func @_max_views_kernel(%arg0: memref<1x64xf32, #tpu.memory_space<vmem>>, %arg1: memref<1x64xf32, #tpu.memory_space<vmem>>, %arg2: memref<1x64xf32, #tpu.memory_space<vmem>>, %arg3: memref<1x64xf32, #tpu.memory_space<vmem>>, %arg4: memref<1x64xf32, #tpu.memory_space<vmem>>) attributes {dimension_semantics = [], scalar_prefetch = 0 : i64, scratch_operands = 0 : i64, tpu.core_type = #tpu.core_type<tc>} {
    %c0 = arith.constant 0 : index
    %c0_0 = arith.constant 0 : index
    %0 = vector.load %arg0[%c0, %c0_0] : memref<1x64xf32, #tpu.memory_space<vmem>>, vector<1x64xf32>
    %c0_1 = arith.constant 0 : index
    %c0_2 = arith.constant 0 : index
    %1 = vector.load %arg1[%c0_1, %c0_2] : memref<1x64xf32, #tpu.memory_space<vmem>>, vector<1x64xf32>
    %2 = arith.maximumf %0, %1 : vector<1x64xf32>
    %c0_3 = arith.constant 0 : index
    %c0_4 = arith.constant 0 : index
    %3 = vector.load %arg2[%c0_3, %c0_4] : memref<1x64xf32, #tpu.memory_space<vmem>>, vector<1x64xf32>
    %4 = arith.maximumf %2, %3 : vector<1x64xf32>
    %c0_5 = arith.constant 0 : index
    %c0_6 = arith.constant 0 : index
    %5 = vector.load %arg3[%c0_5, %c0_6] : memref<1x64xf32, #tpu.memory_space<vmem>>, vector<1x64xf32>
    %6 = arith.maximumf %4, %5 : vector<1x64xf32>
    %c0_7 = arith.constant 0 : index
    %c0_8 = arith.constant 0 : index
    %7 = vector.load %arg4[%c0_7, %c0_8] : memref<1x64xf32, #tpu.memory_space<vmem>>, vector<1x64xf32>
    tpu.vector_store %arg4[%c0_7, %c0_8], %6 {strides = array<i32>} : memref<1x64xf32, #tpu.memory_space<vmem>>, vector<1x64xf32>,
    return
  }
}

module attributes {stable_mosaic.version = 11 : i64} {
  func.func @_matmul_bias_act_kernel(%arg0: memref<16x72xbf16, #tpu.memory_space<vmem>>, %arg1: memref<72x50xbf16, #tpu.memory_space<vmem>>, %arg2: memref<16x1xf32, #tpu.memory_space<vmem>>, %arg3: memref<16x50xf32, #tpu.memory_space<vmem>>) attributes {dimension_semantics = [], scalar_prefetch = 0 : i64, scratch_operands = 0 : i64, tpu.core_type = #tpu.core_type<tc>} {
    %c0 = arith.constant 0 : index
    %c0_0 = arith.constant 0 : index
    %0 = vector.load %arg0[%c0, %c0_0] : memref<16x72xbf16, #tpu.memory_space<vmem>>, vector<16x72xbf16>
    %c0_1 = arith.constant 0 : index
    %c0_2 = arith.constant 0 : index
    %1 = vector.load %arg1[%c0_1, %c0_2] : memref<72x50xbf16, #tpu.memory_space<vmem>>, vector<72x50xbf16>
    %cst = arith.constant dense<0.000000e+00> : vector<16x50xf32>
    %2 = tpu.matmul %0, %1, %cst {dimension_numbers = #tpu.dot_dimension_numbers<[1], [0], [0], [1], [0, 0, 1, 1], [], []>} : vector<16x72xbf16>, vector<72x50xbf16>, vector<16x50xf32> -> vector<16x50xf32>
    %c0_3 = arith.constant 0 : index
    %c0_4 = arith.constant 0 : index
    %3 = vector.load %arg2[%c0_3, %c0_4] : memref<16x1xf32, #tpu.memory_space<vmem>>, vector<16x1xf32>
    %4 = vector.broadcast %3 : vector<16x1xf32> to vector<16x50xf32>
    %5 = arith.addf %2, %4 : vector<16x50xf32>
    %cst_5 = arith.constant 0.000000e+00 : f32
    %6 = vector.broadcast %cst_5 : f32 to vector<16x50xf32>
    %7 = arith.maximumf %5, %6 : vector<16x50xf32>
    %c0_6 = arith.constant 0 : index
    %c0_7 = arith.constant 0 : index
    %8 = vector.load %arg3[%c0_6, %c0_7] : memref<16x50xf32, #tpu.memory_space<vmem>>, vector<16x50xf32>
    tpu.vector_store %arg3[%c0_6, %c0_7], %7 {strides = array<i32>} : memref<16x50xf32, #tpu.memory_space<vmem>>, vector<16x50xf32>,
    return
  }
}

module attributes {stable_mosaic.version = 11 : i64} {
  func.func @_matmul_bias_act_kernel(%arg0: memref<8x400xbf16, #tpu.memory_space<vmem>>, %arg1: memref<400x450xbf16, #tpu.memory_space<vmem>>, %arg2: memref<8x1xf32, #tpu.memory_space<vmem>>, %arg3: memref<8x450xf32, #tpu.memory_space<vmem>>) attributes {dimension_semantics = [], scalar_prefetch = 0 : i64, scratch_operands = 0 : i64, tpu.core_type = #tpu.core_type<tc>} {
    %c0 = arith.constant 0 : index
    %c0_0 = arith.constant 0 : index
    %0 = vector.load %arg0[%c0, %c0_0] : memref<8x400xbf16, #tpu.memory_space<vmem>>, vector<8x400xbf16>
    %c0_1 = arith.constant 0 : index
    %c0_2 = arith.constant 0 : index
    %1 = vector.load %arg1[%c0_1, %c0_2] : memref<400x450xbf16, #tpu.memory_space<vmem>>, vector<400x450xbf16>
    %cst = arith.constant dense<0.000000e+00> : vector<8x450xf32>
    %2 = tpu.matmul %0, %1, %cst {dimension_numbers = #tpu.dot_dimension_numbers<[1], [0], [0], [1], [0, 0, 1, 1], [], []>} : vector<8x400xbf16>, vector<400x450xbf16>, vector<8x450xf32> -> vector<8x450xf32>
    %c0_3 = arith.constant 0 : index
    %c0_4 = arith.constant 0 : index
    %3 = vector.load %arg2[%c0_3, %c0_4] : memref<8x1xf32, #tpu.memory_space<vmem>>, vector<8x1xf32>
    %4 = vector.broadcast %3 : vector<8x1xf32> to vector<8x450xf32>
    %5 = arith.addf %2, %4 : vector<8x450xf32>
    %cst_5 = arith.constant 0.000000e+00 : f32
    %6 = vector.broadcast %cst_5 : f32 to vector<8x450xf32>
    %7 = arith.maximumf %5, %6 : vector<8x450xf32>
    %c0_6 = arith.constant 0 : index
    %c0_7 = arith.constant 0 : index
    %8 = vector.load %arg3[%c0_6, %c0_7] : memref<8x450xf32, #tpu.memory_space<vmem>>, vector<8x450xf32>
    tpu.vector_store %arg3[%c0_6, %c0_7], %7 {strides = array<i32>} : memref<8x450xf32, #tpu.memory_space<vmem>>, vector<8x450xf32>,
    return
  }
}

module attributes {stable_mosaic.version = 11 : i64} {
  func.func @_matmul_bias_act_kernel(%arg0: memref<1x32xbf16, #tpu.memory_space<vmem>>, %arg1: memref<32x1568xbf16, #tpu.memory_space<vmem>>, %arg2: memref<1x1xf32, #tpu.memory_space<vmem>>, %arg3: memref<1x1568xf32, #tpu.memory_space<vmem>>) attributes {dimension_semantics = [], scalar_prefetch = 0 : i64, scratch_operands = 0 : i64, tpu.core_type = #tpu.core_type<tc>} {
    %c0 = arith.constant 0 : index
    %c0_0 = arith.constant 0 : index
    %0 = vector.load %arg0[%c0, %c0_0] : memref<1x32xbf16, #tpu.memory_space<vmem>>, vector<1x32xbf16>
    %c0_1 = arith.constant 0 : index
    %c0_2 = arith.constant 0 : index
    %1 = vector.load %arg1[%c0_1, %c0_2] : memref<32x1568xbf16, #tpu.memory_space<vmem>>, vector<32x1568xbf16>
    %cst = arith.constant dense<0.000000e+00> : vector<1x1568xf32>
    %2 = tpu.matmul %0, %1, %cst {dimension_numbers = #tpu.dot_dimension_numbers<[1], [0], [0], [1], [0, 0, 1, 1], [], []>} : vector<1x32xbf16>, vector<32x1568xbf16>, vector<1x1568xf32> -> vector<1x1568xf32>
    %c0_3 = arith.constant 0 : index
    %c0_4 = arith.constant 0 : index
    %3 = vector.load %arg2[%c0_3, %c0_4] : memref<1x1xf32, #tpu.memory_space<vmem>>, vector<1x1xf32>
    %4 = vector.broadcast %3 : vector<1x1xf32> to vector<1x1568xf32>
    %5 = arith.addf %2, %4 : vector<1x1568xf32>
    %6 = math.tanh %5 : vector<1x1568xf32>
    %c0_5 = arith.constant 0 : index
    %c0_6 = arith.constant 0 : index
    %7 = vector.load %arg3[%c0_5, %c0_6] : memref<1x1568xf32, #tpu.memory_space<vmem>>, vector<1x1568xf32>
    tpu.vector_store %arg3[%c0_5, %c0_6], %6 {strides = array<i32>} : memref<1x1568xf32, #tpu.memory_space<vmem>>, vector<1x1568xf32>,
    return
  }
}

</mosaic_0001>

<llo_original>
// kernel: cae_forward.8
$region0: #{cae_forward.8}
  #allocation0 [shape = 'u32[]', space=smem, size = 0x4, offset = 0x4, fixed_abs, tag = 'smem constant byte address 0x4 - core index']
  #allocation1 [shape = 'u32[144,128]{1,0:T(1,128)}', space=vmem, size = 0x12000, scoped, tag = 'internal scratch']
  %s0 = inlined_call_operand.vmem [shape: f32[1,800], index: 0, kind: input, shape index: {}]
  %s1 = inlined_call_operand.vmem [shape: f32[1,800], index: 1, kind: input, shape index: {}]
  %s2 = inlined_call_operand.vmem [shape: f32[1,800], index: 2, kind: input, shape index: {}]
  %s3 = inlined_call_operand.vmem [shape: f32[1,800], index: 3, kind: input, shape index: {}]
  %s4 = inlined_call_operand.vmem [shape: f32[1,800], index: 4, kind: output, shape index: {}]
  %s5 = sld [smem:[#allocation0]]
  $region26: #{cae_forward.8} parent=0
    _
  %s7 = ssub.s32 1, %s5
  %s8 = scalar_select 0, %s7, %s5
  // Predicated region
  $region2: #{cae_forward.8} parent=0 // pred_check
    _
  $region3: #{cae_forward.8} parent=0 // pred_check_branch
    %10 = sbr.rel (0) target = $region5
  $region4: #{cae_forward.8} parent=0 // pred_region
    _
  $region5: #{cae_forward.8} parent=0 // pred_fallthru
    _
  // Predicated region
  $region6: #{cae_forward.8} parent=0 // pred_check
    _
  $region7: #{cae_forward.8} parent=0 // pred_check_branch
    %12 = sbr.rel (0) target = $region9
  $region8: #{cae_forward.8} parent=0 // pred_region
    _
  $region9: #{cae_forward.8} parent=0 // pred_fallthru
    _
  // Predicated region
  $region10: #{cae_forward.8} parent=0 // pred_check
    _
  $region11: #{cae_forward.8} parent=0 // pred_check_branch
    %14 = sbr.rel (0) target = $region13
  $region12: #{cae_forward.8} parent=0 // pred_region
    _
  $region13: #{cae_forward.8} parent=0 // pred_fallthru
    _
  // Predicated region
  $region14: #{cae_forward.8} parent=0 // pred_check
    _
  $region15: #{cae_forward.8} parent=0 // pred_check_branch
    %16 = sbr.rel (0) target = $region17
  $region16: #{cae_forward.8} parent=0 // pred_region
    _
  $region17: #{cae_forward.8} parent=0 // pred_fallthru
    _
  %v17 = vld [vmem:[%s0] sm:$0x7f]
  %v18 = vld [vmem:[%s1] sm:$0x7f]
  %v19 = vmax.f32 %v17, %v18
  %v20 = vld [vmem:[%s2] sm:$0x7f]
  %v21 = vmax.f32 %v19, %v20
  %v22 = vld [vmem:[%s3] sm:$0x7f]
  %v23 = vmax.f32 %v21, %v22
  %v24 = vlaneseq
  %vm25 = vcmp.ge.s32.totalorder %v24, 0
  %vm26 = vcmp.lt.s32.totalorder %v24, 800
  %vm27 = vmand %vm25, %vm26
  %28 = vst.msk [vmem:[%s4] sm:$0x7f] %vm27, %v23
  // Predicated region
  $region18: #{cae_forward.8} parent=0 // pred_check
    _
  $region19: #{cae_forward.8} parent=0 // pred_check_branch
    %30 = sbr.rel (0) target = $region21
  $region20: #{cae_forward.8} parent=0 // pred_region
    _
  $region21: #{cae_forward.8} parent=0 // pred_fallthru
    _
  // Predicated region
  $region22: #{cae_forward.8} parent=0 // pred_check
    _
  $region23: #{cae_forward.8} parent=0 // pred_check_branch
    %32 = sbr.rel (0) target = $region25
  $region24: #{cae_forward.8} parent=0 // pred_region
    _
  $region25: #{cae_forward.8} parent=0 // pred_fallthru
    _

// kernel: cae_forward.7
$region0: #{cae_forward.7}
  #allocation0 [shape = 'u32[]', space=smem, size = 0x4, offset = 0x4, fixed_abs, tag = 'smem constant byte address 0x4 - core index']
  #allocation1 [shape = 'u32[144,128]{1,0:T(1,128)}', space=vmem, size = 0x12000, scoped, tag = 'internal scratch']
  %s0 = inlined_call_operand.vmem [shape: bf16[16,9], index: 0, kind: input, shape index: {}]
  %s1 = inlined_call_operand.vmem [shape: bf16[9,200], index: 1, kind: input, shape index: {}]
  %s2 = inlined_call_operand.vmem [shape: f32[16,1], index: 2, kind: input, shape index: {}]
  %s3 = inlined_call_operand.vmem [shape: f32[16,200], index: 3, kind: output, shape index: {}]
  %s4 = sld [smem:[#allocation0]]
  $region22: #{cae_forward.7} parent=0
    _
  %s6 = ssub.s32 1, %s4
  %s7 = scalar_select 0, %s6, %s4
  // Predicated region
  $region2: #{cae_forward.7} parent=0 // pred_check
    _
  $region3: #{cae_forward.7} parent=0 // pred_check_branch
    %9 = sbr.rel (0) target = $region5
  $region4: #{cae_forward.7} parent=0 // pred_region
    _
  $region5: #{cae_forward.7} parent=0 // pred_fallthru
    _
  // Predicated region
  $region6: #{cae_forward.7} parent=0 // pred_check
    _
  $region7: #{cae_forward.7} parent=0 // pred_check_branch
    %11 = sbr.rel (0) target = $region9
  $region8: #{cae_forward.7} parent=0 // pred_region
    _
  $region9: #{cae_forward.7} parent=0 // pred_fallthru
    _
  // Predicated region
  $region10: #{cae_forward.7} parent=0 // pred_check
    _
  $region11: #{cae_forward.7} parent=0 // pred_check_branch
    %13 = sbr.rel (0) target = $region13
  $region12: #{cae_forward.7} parent=0 // pred_region
    _
  $region13: #{cae_forward.7} parent=0 // pred_fallthru
    _
  %v15 = vld [vmem:[%s0] sm:$0xf]
  %v16 = vld [vmem:[%s0 + $0x4] sm:$0xf]
  %v17 = vld [vmem:[%s1] sm:$0xff]
  %v18 = vld [vmem:[%s1 + $0x8] sm:$0x11]
  %v19 = vld [vmem:[%s2] sm:$0xff]
  %v20 = vld [vmem:[%s2 + $0x8] sm:$0xff]
  %22 = vset.pattern.permute.xlu0 0
  %23 = vperm.xlu0 %22, %v19
  %v24 = vpop.permute.xlu0 %23
  %27 = vset.pattern.permute.xlu0 0
  %28 = vperm.xlu0 %27, %v20
  %v29 = vpop.permute.xlu0 %28
  %v33 = vunpack.c.l.b16 %v15
  %v34 = vunpack.c.l.b16 %v16
  %v35 = vpack.c.b16 %v34, %v33
  %v38 = vunpack.c.l.b16 %v17
  %v39 = vunpack.c.h.b16 %v17
  %v40 = vunpack.c.l.b16 %v18
  %v41 = vunpack.c.h.b16 %v18
  %v42 = vpack.c.b16 %v40, %v38
  %v43 = vpack.c.b16 %v41, %v39
  %vm44 = vcmask 72704
  %v46 = vsel %vm44, %v35, 0
  %vm48 = vcmask 1043456
  %vm49 = vcmask 1044480
  %v50 = vsel %vm48, 4294967295, 65535
  %v51 = vsel %vm49, %v50, 0
  %v53 = vand.u32 %v42, %v51
  %v56 = vand.u32 %v43, %v51
  %58 = vmatprep.subr.bf16.mxu0 %v56
  %59 = vmatpush1.bf16.msra.mxu0 %v53
  %60 = vmatprep.subr.bf16.mxu0 0
  %61 = vmatpush1.bf16.msra.mxu0 0
  %62 = vmatprep.subr.bf16.mxu0 0
  %63 = vmatpush1.bf16.msra.mxu0 0
  %64 = vmatprep.subr.bf16.mxu0 0
  %65 = vmatpush1.bf16.msra.mxu0 0
  %66 = vmatprep.subr.bf16.mxu0 0
  %67 = vmatpush1.bf16.msra.mxu0 0
  %68 = vmatprep.subr.bf16.mxu0 0
  %69 = vmatpush1.bf16.msra.mxu0 0
  %70 = vmatprep.subr.bf16.mxu0 0
  %71 = vmatpush1.bf16.msra.mxu0 0
  %72 = vmatprep.subr.bf16.mxu0 0
  %73 = vmatpush1.bf16.msra.mxu0 0
  %74 = vmatprep.subr.bf16.mxu0 0
  %75 = vmatpush1.bf16.msra.mxu0 0
  %76 = vmatprep.subr.bf16.mxu0 0
  %77 = vmatpush1.bf16.msra.mxu0 0
  %78 = vmatprep.subr.bf16.mxu0 0
  %79 = vmatpush1.bf16.msra.mxu0 0
  %80 = vmatprep.subr.bf16.mxu0 0
  %81 = vmatpush1.bf16.msra.mxu0 0
  %82 = vmatprep.subr.bf16.mxu0 0
  %83 = vmatpush1.bf16.msra.mxu0 0
  %84 = vmatprep.subr.bf16.mxu0 0
  %85 = vmatpush1.bf16.msra.mxu0 0
  %86 = vmatprep.subr.bf16.mxu0 0
  %87 = vmatpush1.bf16.msra.mxu0 0
  %88 = vmatprep.subr.bf16.mxu0 0
  %89 = vmatpush1.bf16.msra.mxu0 0
  %90 = vmatprep.mubr.bf16.mxu0 0
  %91 = vmatmul.mubr.bf16.gmra.mrb[0].mxu0 %v46
  %v92 = vpop.f32.mrb[0].mxu0
  %v93 = vadd.f32 %v24, %v92
  %v94 = vpop.f32.mrb[0].mxu0
  %v95 = vadd.f32 %v24, %v94
  %v96 = vpop.f32.mrb[0].mxu0
  %v97 = vadd.f32 %v29, %v96
  %v98 = vpop.f32.mrb[0].mxu0
  %v99 = vadd.f32 %v29, %v98
  %100 = vdwg.mxu0
  %v101 = vmax.f32 %v93, 0.0
  %v102 = vmax.f32 %v95, 0.0
  %v103 = vmax.f32 %v97, 0.0
  %v104 = vmax.f32 %v99, 0.0
  %105 = vst [vmem:[%s3] sm:$0xff] %v101
  %vm106 = vcmask 588800
  %107 = vst.msk [vmem:[%s3 + $0x8] sm:$0xff] %vm106, %v102
  %108 = vst [vmem:[%s3 + $0x10] sm:$0xff] %v103
  %109 = vst.msk [vmem:[%s3 + $0x18] sm:$0xff] %vm106, %v104
  // Predicated region
  $region14: #{cae_forward.7} parent=0 // pred_check
    _
  $region15: #{cae_forward.7} parent=0 // pred_check_branch
    %111 = sbr.rel (0) target = $region17
  $region16: #{cae_forward.7} parent=0 // pred_region
    _
  $region17: #{cae_forward.7} parent=0 // pred_fallthru
    _
  // Predicated region
  $region18: #{cae_forward.7} parent=0 // pred_check
    _
  $region19: #{cae_forward.7} parent=0 // pred_check_branch
    %113 = sbr.rel (0) target = $region21
  $region20: #{cae_forward.7} parent=0 // pred_region
    _
  $region21: #{cae_forward.7} parent=0 // pred_fallthru
    _

// kernel: cae_forward.9
$region0: #{cae_forward.9}
  #allocation0 [shape = 'u32[]', space=smem, size = 0x4, offset = 0x4, fixed_abs, tag = 'smem constant byte address 0x4 - core index']
  #allocation1 [shape = 'u32[144,128]{1,0:T(1,128)}', space=vmem, size = 0x12000, scoped, tag = 'internal scratch']
  %s0 = inlined_call_operand.vmem [shape: bf16[8,144], index: 0, kind: input, shape index: {}]
  %s1 = inlined_call_operand.vmem [shape: bf16[144,18], index: 1, kind: input, shape index: {}]
  %s2 = inlined_call_operand.vmem [shape: f32[8,1], index: 2, kind: input, shape index: {}]
  %s3 = inlined_call_operand.vmem [shape: f32[8,18], index: 3, kind: output, shape index: {}]
  %s4 = sld [smem:[#allocation0]]
  $region22: #{cae_forward.9} parent=0
    _
  %s6 = ssub.s32 1, %s4
  %s7 = scalar_select 0, %s6, %s4
  // Predicated region
  $region2: #{cae_forward.9} parent=0 // pred_check
    _
  $region3: #{cae_forward.9} parent=0 // pred_check_branch
    %9 = sbr.rel (0) target = $region5
  $region4: #{cae_forward.9} parent=0 // pred_region
    _
  $region5: #{cae_forward.9} parent=0 // pred_fallthru
    _
  // Predicated region
  $region6: #{cae_forward.9} parent=0 // pred_check
    _
  $region7: #{cae_forward.9} parent=0 // pred_check_branch
    %11 = sbr.rel (0) target = $region9
  $region8: #{cae_forward.9} parent=0 // pred_region
    _
  $region9: #{cae_forward.9} parent=0 // pred_fallthru
    _
  // Predicated region
  $region10: #{cae_forward.9} parent=0 // pred_check
    _
  $region11: #{cae_forward.9} parent=0 // pred_check_branch
    %13 = sbr.rel (0) target = $region13
  $region12: #{cae_forward.9} parent=0 // pred_region
    _
  $region13: #{cae_forward.9} parent=0 // pred_fallthru
    _
  %v15 = vld [vmem:[%s0] sm:$0xff]
  %v16 = vld [vmem:[%s1] sm:$0xf]
  %v17 = vld [vmem:[%s1 + $0x4] sm:$0xf]
  %v18 = vld [vmem:[%s1 + $0x8] sm:$0xf]
  %v19 = vld [vmem:[%s1 + $0xc] sm:$0xf]
  %v20 = vld [vmem:[%s1 + $0x10] sm:$0xf]
  %v21 = vld [vmem:[%s1 + $0x14] sm:$0xf]
  %v22 = vld [vmem:[%s1 + $0x18] sm:$0xf]
  %v23 = vld [vmem:[%s1 + $0x1c] sm:$0xf]
  %v24 = vld [vmem:[%s1 + $0x20] sm:$0xf]
  %v25 = vld [vmem:[%s1 + $0x24] sm:$0xf]
  %v26 = vld [vmem:[%s1 + $0x28] sm:$0xf]
  %v27 = vld [vmem:[%s1 + $0x2c] sm:$0xf]
  %v28 = vld [vmem:[%s1 + $0x30] sm:$0xf]
  %v29 = vld [vmem:[%s1 + $0x34] sm:$0xf]
  %v30 = vld [vmem:[%s1 + $0x38] sm:$0xf]
  %v31 = vld [vmem:[%s1 + $0x3c] sm:$0xf]
  %v32 = vld [vmem:[%s1 + $0x40] sm:$0xf]
  %v33 = vld [vmem:[%s1 + $0x44] sm:$0xf]
  %v34 = vld [vmem:[%s2] sm:$0xff]
  %36 = vset.pattern.permute.xlu0 0
  %37 = vperm.xlu0 %36, %v34
  %v38 = vpop.permute.xlu0 %37
  %v41 = vunpack.c.l.b16 %v15
  %v42 = vunpack.c.h.b16 %v15
  %v43 = vpack.c.b16 %v41, %v41
  %v44 = vpack.c.b16 %v42, %v42
  %v64 = vunpack.c.l.b16 %v16
  %v65 = vunpack.c.l.b16 %v17
  %v66 = vunpack.c.l.b16 %v18
  %v67 = vunpack.c.l.b16 %v19
  %v68 = vunpack.c.l.b16 %v20
  %v69 = vunpack.c.l.b16 %v21
  %v70 = vunpack.c.l.b16 %v22
  %v71 = vunpack.c.l.b16 %v23
  %v72 = vunpack.c.l.b16 %v24
  %v73 = vunpack.c.l.b16 %v25
  %v74 = vunpack.c.l.b16 %v26
  %v75 = vunpack.c.l.b16 %v27
  %v76 = vunpack.c.l.b16 %v28
  %v77 = vunpack.c.l.b16 %v29
  %v78 = vunpack.c.l.b16 %v30
  %v79 = vunpack.c.l.b16 %v31
  %v80 = vunpack.c.l.b16 %v32
  %v81 = vunpack.c.l.b16 %v33
  %v82 = vpack.c.b16 %v65, %v64
  %v83 = vpack.c.b16 %v67, %v66
  %v84 = vpack.c.b16 %v69, %v68
  %v85 = vpack.c.b16 %v71, %v70
  %v86 = vpack.c.b16 %v73, %v72
  %v87 = vpack.c.b16 %v75, %v74
  %v88 = vpack.c.b16 %v77, %v76
  %v89 = vpack.c.b16 %v79, %v78
  %v90 = vpack.c.b16 %v81, %v80
  %vm100 = vcmask 130048
  %v102 = vsel %vm100, %v44, 0
  %104 = vmatprep.subr.bf16.mxu0 0
  %105 = vmatpush1.bf16.msra.mxu0 %v82
  %106 = vmatprep.subr.bf16.mxu0 0
  %107 = vmatpush1.bf16.msra.mxu0 %v83
  %108 = vmatprep.subr.bf16.mxu0 0
  %109 = vmatpush1.bf16.msra.mxu0 %v84
  %110 = vmatprep.subr.bf16.mxu0 0
  %111 = vmatpush1.bf16.msra.mxu0 %v85
  %112 = vmatprep.subr.bf16.mxu0 0
  %113 = vmatpush1.bf16.msra.mxu0 %v86
  %114 = vmatprep.subr.bf16.mxu0 0
  %115 = vmatpush1.bf16.msra.mxu0 %v87
  %116 = vmatprep.subr.bf16.mxu0 0
  %117 = vmatpush1.bf16.msra.mxu0 %v88
  %118 = vmatprep.subr.bf16.mxu0 0
  %119 = vmatpush1.bf16.msra.mxu0 %v89
  %120 = vmatprep.subr.bf16.mxu0 0
  %121 = vmatpush1.bf16.msra.mxu0 %v90
  %122 = vmatprep.subr.bf16.mxu0 0
  %123 = vmatpush1.bf16.msra.mxu0 0
  %124 = vmatprep.subr.bf16.mxu0 0
  %125 = vmatpush1.bf16.msra.mxu0 0
  %126 = vmatprep.subr.bf16.mxu0 0
  %127 = vmatpush1.bf16.msra.mxu0 0
  %128 = vmatprep.subr.bf16.mxu0 0
  %129 = vmatpush1.bf16.msra.mxu0 0
  %130 = vmatprep.subr.bf16.mxu0 0
  %131 = vmatpush1.bf16.msra.mxu0 0
  %132 = vmatprep.subr.bf16.mxu0 0
  %133 = vmatpush1.bf16.msra.mxu0 0
  %134 = vmatprep.subr.bf16.mxu0 0
  %135 = vmatpush1.bf16.msra.mxu0 0
  %136 = vmatprep.mubr.bf16.mxu0 %v102
  %137 = vmatmul.mubr.bf16.gmra.mrb[0].mxu0 %v43
  %v138 = vpop.f32.mrb[0].mxu0
  %v139 = vadd.f32 %v38, %v138
  %v140 = vpop.f32.mrb[0].mxu0
  %v141 = vpop.f32.mrb[0].mxu0
  %v142 = vpop.f32.mrb[0].mxu0
  %143 = vdwg.mxu0
  %v144 = vmax.f32 %v139, 0.0
  %vm145 = vcmask 146432
  %146 = vst.msk [vmem:[%s3] sm:$0xff] %vm145, %v144
  // Predicated region
  $region14: #{cae_forward.9} parent=0 // pred_check
    _
  $region15: #{cae_forward.9} parent=0 // pred_check_branch
    %148 = sbr.rel (0) target = $region17
  $region16: #{cae_forward.9} parent=0 // pred_region
    _
  $region17: #{cae_forward.9} parent=0 // pred_fallthru
    _
  // Predicated region
  $region18: #{cae_forward.9} parent=0 // pred_check
    _
  $region19: #{cae_forward.9} parent=0 // pred_check_branch
    %150 = sbr.rel (0) target = $region21
  $region20: #{cae_forward.9} parent=0 // pred_region
    _
  $region21: #{cae_forward.9} parent=0 // pred_fallthru
    _

// kernel: cae_forward.10
$region0: #{cae_forward.10}
  #allocation0 [shape = 'u32[]', space=smem, size = 0x4, offset = 0x4, fixed_abs, tag = 'smem constant byte address 0x4 - core index']
  #allocation1 [shape = 'u32[144,128]{1,0:T(1,128)}', space=vmem, size = 0x12000, scoped, tag = 'internal scratch']
  %s0 = inlined_call_operand.vmem [shape: f32[1,64], index: 0, kind: input, shape index: {}]
  %s1 = inlined_call_operand.vmem [shape: f32[1,64], index: 1, kind: input, shape index: {}]
  %s2 = inlined_call_operand.vmem [shape: f32[1,64], index: 2, kind: input, shape index: {}]
  %s3 = inlined_call_operand.vmem [shape: f32[1,64], index: 3, kind: input, shape index: {}]
  %s4 = inlined_call_operand.vmem [shape: f32[1,64], index: 4, kind: output, shape index: {}]
  %s5 = sld [smem:[#allocation0]]
  $region26: #{cae_forward.10} parent=0
    _
  %s7 = ssub.s32 1, %s5
  %s8 = scalar_select 0, %s7, %s5
  // Predicated region
  $region2: #{cae_forward.10} parent=0 // pred_check
    _
  $region3: #{cae_forward.10} parent=0 // pred_check_branch
    %10 = sbr.rel (0) target = $region5
  $region4: #{cae_forward.10} parent=0 // pred_region
    _
  $region5: #{cae_forward.10} parent=0 // pred_fallthru
    _
  // Predicated region
  $region6: #{cae_forward.10} parent=0 // pred_check
    _
  $region7: #{cae_forward.10} parent=0 // pred_check_branch
    %12 = sbr.rel (0) target = $region9
  $region8: #{cae_forward.10} parent=0 // pred_region
    _
  $region9: #{cae_forward.10} parent=0 // pred_fallthru
    _
  // Predicated region
  $region10: #{cae_forward.10} parent=0 // pred_check
    _
  $region11: #{cae_forward.10} parent=0 // pred_check_branch
    %14 = sbr.rel (0) target = $region13
  $region12: #{cae_forward.10} parent=0 // pred_region
    _
  $region13: #{cae_forward.10} parent=0 // pred_fallthru
    _
  // Predicated region
  $region14: #{cae_forward.10} parent=0 // pred_check
    _
  $region15: #{cae_forward.10} parent=0 // pred_check_branch
    %16 = sbr.rel (0) target = $region17
  $region16: #{cae_forward.10} parent=0 // pred_region
    _
  $region17: #{cae_forward.10} parent=0 // pred_fallthru
    _
  %v17 = vld [vmem:[%s0] sm:$0x1]
  %v18 = vld [vmem:[%s1] sm:$0x1]
  %v19 = vmax.f32 %v17, %v18
  %v20 = vld [vmem:[%s2] sm:$0x1]
  %v21 = vmax.f32 %v19, %v20
  %v22 = vld [vmem:[%s3] sm:$0x1]
  %v23 = vmax.f32 %v21, %v22
  %vm24 = vcmask 516096
  %25 = vst.msk [vmem:[%s4] sm:$0x1] %vm24, %v23
  // Predicated region
  $region18: #{cae_forward.10} parent=0 // pred_check
    _
  $region19: #{cae_forward.10} parent=0 // pred_check_branch
    %27 = sbr.rel (0) target = $region21
  $region20: #{cae_forward.10} parent=0 // pred_region
    _
  $region21: #{cae_forward.10} parent=0 // pred_fallthru
    _
  // Predicated region
  $region22: #{cae_forward.10} parent=0 // pred_check
    _
  $region23: #{cae_forward.10} parent=0 // pred_check_branch
    %29 = sbr.rel (0) target = $region25
  $region24: #{cae_forward.10} parent=0 // pred_region
    _
  $region25: #{cae_forward.10} parent=0 // pred_fallthru
    _

// kernel: cae_forward.11
$region0: #{cae_forward.11}
  #allocation0 [shape = 'u32[]', space=smem, size = 0x4, offset = 0x4, fixed_abs, tag = 'smem constant byte address 0x4 - core index']
  #allocation1 [shape = 'u32[144,128]{1,0:T(1,128)}', space=vmem, size = 0x12000, scoped, tag = 'internal scratch']
  %s0 = inlined_call_operand.vmem [shape: bf16[16,72], index: 0, kind: input, shape index: {}]
  %s1 = inlined_call_operand.vmem [shape: bf16[72,50], index: 1, kind: input, shape index: {}]
  %s2 = inlined_call_operand.vmem [shape: f32[16,1], index: 2, kind: input, shape index: {}]
  %s3 = inlined_call_operand.vmem [shape: f32[16,50], index: 3, kind: output, shape index: {}]
  %s4 = sld [smem:[#allocation0]]
  $region22: #{cae_forward.11} parent=0
    _
  %s6 = ssub.s32 1, %s4
  %s7 = scalar_select 0, %s6, %s4
  // Predicated region
  $region2: #{cae_forward.11} parent=0 // pred_check
    _
  $region3: #{cae_forward.11} parent=0 // pred_check_branch
    %9 = sbr.rel (0) target = $region5
  $region4: #{cae_forward.11} parent=0 // pred_region
    _
  $region5: #{cae_forward.11} parent=0 // pred_fallthru
    _
  // Predicated region
  $region6: #{cae_forward.11} parent=0 // pred_check
    _
  $region7: #{cae_forward.11} parent=0 // pred_check_branch
    %11 = sbr.rel (0) target = $region9
  $region8: #{cae_forward.11} parent=0 // pred_region
    _
  $region9: #{cae_forward.11} parent=0 // pred_fallthru
    _
  // Predicated region
  $region10: #{cae_forward.11} parent=0 // pred_check
    _
  $region11: #{cae_forward.11} parent=0 // pred_check_branch
    %13 = sbr.rel (0) target = $region13
  $region12: #{cae_forward.11} parent=0 // pred_region
    _
  $region13: #{cae_forward.11} parent=0 // pred_fallthru
    _
  %v15 = vld [vmem:[%s0] sm:$0xf]
  %v16 = vld [vmem:[%s0 + $0x4] sm:$0xf]
  %v17 = vld [vmem:[%s1] sm:$0xf]
  %v18 = vld [vmem:[%s1 + $0x4] sm:$0xf]
  %v19 = vld [vmem:[%s1 + $0x8] sm:$0xf]
  %v20 = vld [vmem:[%s1 + $0xc] sm:$0xf]
  %v21 = vld [vmem:[%s1 + $0x10] sm:$0xf]
  %v22 = vld [vmem:[%s1 + $0x14] sm:$0xf]
  %v23 = vld [vmem:[%s1 + $0x18] sm:$0xf]
  %v24 = vld [vmem:[%s1 + $0x1c] sm:$0xf]
  %v25 = vld [vmem:[%s1 + $0x20] sm:$0xf]
  %v26 = vld [vmem:[%s2] sm:$0xff]
  %v27 = vld [vmem:[%s2 + $0x8] sm:$0xff]
  %29 = vset.pattern.permute.xlu0 0
  %30 = vperm.xlu0 %29, %v26
  %v31 = vpop.permute.xlu0 %30
  %34 = vset.pattern.permute.xlu0 0
  %35 = vperm.xlu0 %34, %v27
  %v36 = vpop.permute.xlu0 %35
  %v40 = vunpack.c.l.b16 %v15
  %v41 = vunpack.c.l.b16 %v16
  %v42 = vpack.c.b16 %v41, %v40
  %v52 = vunpack.c.l.b16 %v17
  %v53 = vunpack.c.l.b16 %v18
  %v54 = vunpack.c.l.b16 %v19
  %v55 = vunpack.c.l.b16 %v20
  %v56 = vunpack.c.l.b16 %v21
  %v57 = vunpack.c.l.b16 %v22
  %v58 = vunpack.c.l.b16 %v23
  %v59 = vunpack.c.l.b16 %v24
  %v60 = vunpack.c.l.b16 %v25
  %v61 = vpack.c.b16 %v53, %v52
  %v62 = vpack.c.b16 %v55, %v54
  %v63 = vpack.c.b16 %v57, %v56
  %v64 = vpack.c.b16 %v59, %v58
  %v65 = vpack.c.b16 %v60, %v60
  %vm70 = vcmask 588800
  %v72 = vsel %vm70, %v42, 0
  %vm74 = vcmask 1043456
  %v76 = vsel %vm74, %v65, 0
  %78 = vmatprep.subr.bf16.mxu0 0
  %79 = vmatpush1.bf16.msra.mxu0 %v61
  %80 = vmatprep.subr.bf16.mxu0 0
  %81 = vmatpush1.bf16.msra.mxu0 %v62
  %82 = vmatprep.subr.bf16.mxu0 0
  %83 = vmatpush1.bf16.msra.mxu0 %v63
  %84 = vmatprep.subr.bf16.mxu0 0
  %85 = vmatpush1.bf16.msra.mxu0 %v64
  %86 = vmatprep.subr.bf16.mxu0 0
  %87 = vmatpush1.bf16.msra.mxu0 %v76
  %88 = vmatprep.subr.bf16.mxu0 0
  %89 = vmatpush1.bf16.msra.mxu0 0
  %90 = vmatprep.subr.bf16.mxu0 0
  %91 = vmatpush1.bf16.msra.mxu0 0
  %92 = vmatprep.subr.bf16.mxu0 0
  %93 = vmatpush1.bf16.msra.mxu0 0
  %94 = vmatprep.subr.bf16.mxu0 0
  %95 = vmatpush1.bf16.msra.mxu0 0
  %96 = vmatprep.subr.bf16.mxu0 0
  %97 = vmatpush1.bf16.msra.mxu0 0
  %98 = vmatprep.subr.bf16.mxu0 0
  %99 = vmatpush1.bf16.msra.mxu0 0
  %100 = vmatprep.subr.bf16.mxu0 0
  %101 = vmatpush1.bf16.msra.mxu0 0
  %102 = vmatprep.subr.bf16.mxu0 0
  %103 = vmatpush1.bf16.msra.mxu0 0
  %104 = vmatprep.subr.bf16.mxu0 0
  %105 = vmatpush1.bf16.msra.mxu0 0
  %106 = vmatprep.subr.bf16.mxu0 0
  %107 = vmatpush1.bf16.msra.mxu0 0
  %108 = vmatprep.subr.bf16.mxu0 0
  %109 = vmatpush1.bf16.msra.mxu0 0
  %110 = vmatprep.mubr.bf16.mxu0 0
  %111 = vmatmul.mubr.bf16.gmra.mrb[0].mxu0 %v72
  %v112 = vpop.f32.mrb[0].mxu0
  %v113 = vadd.f32 %v31, %v112
  %v114 = vpop.f32.mrb[0].mxu0
  %v115 = vpop.f32.mrb[0].mxu0
  %v116 = vadd.f32 %v36, %v115
  %v117 = vpop.f32.mrb[0].mxu0
  %118 = vdwg.mxu0
  %v119 = vmax.f32 %v113, 0.0
  %v120 = vmax.f32 %v116, 0.0
  %vm121 = vcmask 408576
  %122 = vst.msk [vmem:[%s3] sm:$0xff] %vm121, %v119
  %123 = vst.msk [vmem:[%s3 + $0x8] sm:$0xff] %vm121, %v120
  // Predicated region
  $region14: #{cae_forward.11} parent=0 // pred_check
    _
  $region15: #{cae_forward.11} parent=0 // pred_check_branch
    %125 = sbr.rel (0) target = $region17
  $region16: #{cae_forward.11} parent=0 // pred_region
    _
  $region17: #{cae_forward.11} parent=0 // pred_fallthru
    _
  // Predicated region
  $region18: #{cae_forward.11} parent=0 // pred_check
    _
  $region19: #{cae_forward.11} parent=0 // pred_check_branch
    %127 = sbr.rel (0) target = $region21
  $region20: #{cae_forward.11} parent=0 // pred_region
    _
  $region21: #{cae_forward.11} parent=0 // pred_fallthru
    _

// kernel: cae_forward.12
$region0: #{cae_forward.12}
  #allocation0 [shape = 'u32[]', space=smem, size = 0x4, offset = 0x4, fixed_abs, tag = 'smem constant byte address 0x4 - core index']
  #allocation1 [shape = 'u32[144,128]{1,0:T(1,128)}', space=vmem, size = 0x12000, scoped, tag = 'internal scratch']
  %s0 = inlined_call_operand.vmem [shape: bf16[8,400], index: 0, kind: input, shape index: {}]
  %s1 = inlined_call_operand.vmem [shape: bf16[400,450], index: 1, kind: input, shape index: {}]
  %s2 = inlined_call_operand.vmem [shape: f32[8,1], index: 2, kind: input, shape index: {}]
  %s3 = inlined_call_operand.vmem [shape: f32[8,450], index: 3, kind: output, shape index: {}]
  %s4 = sld [smem:[#allocation0]]
  $region22: #{cae_forward.12} parent=0
    _
  %s6 = ssub.s32 1, %s4
  %s7 = scalar_select 0, %s6, %s4
  // Predicated region
  $region2: #{cae_forward.12} parent=0 // pred_check
    _
  $region3: #{cae_forward.12} parent=0 // pred_check_branch
    %9 = sbr.rel (0) target = $region5
  $region4: #{cae_forward.12} parent=0 // pred_region
    _
  $region5: #{cae_forward.12} parent=0 // pred_fallthru
    _
  // Predicated region
  $region6: #{cae_forward.12} parent=0 // pred_check
    _
  $region7: #{cae_forward.12} parent=0 // pred_check_branch
    %11 = sbr.rel (0) target = $region9
  $region8: #{cae_forward.12} parent=0 // pred_region
    _
  $region9: #{cae_forward.12} parent=0 // pred_fallthru
    _
  // Predicated region
  $region10: #{cae_forward.12} parent=0 // pred_check
    _
  $region11: #{cae_forward.12} parent=0 // pred_check_branch
    %13 = sbr.rel (0) target = $region13
  $region12: #{cae_forward.12} parent=0 // pred_region
    _
  $region13: #{cae_forward.12} parent=0 // pred_fallthru
    _
  %v15 = vld [vmem:[%s0] sm:$0xff]
  %v16 = vld [vmem:[%s0 + $0x8] sm:$0xff]
  %v17 = vld [vmem:[%s1] sm:$0xff]
  %v18 = vld [vmem:[%s1 + $0x8] sm:$0xff]
  %v19 = vld [vmem:[%s1 + $0x10] sm:$0xff]
  %v20 = vld [vmem:[%s1 + $0x18] sm:$0xff]
  %v21 = vld [vmem:[%s1 + $0x20] sm:$0xff]
  %v22 = vld [vmem:[%s1 + $0x28] sm:$0xff]
  %v23 = vld [vmem:[%s1 + $0x30] sm:$0xff]
  %v24 = vld [vmem:[%s1 + $0x38] sm:$0xff]
  %v25 = vld [vmem:[%s1 + $0x40] sm:$0xff]
  %v26 = vld [vmem:[%s1 + $0x48] sm:$0xff]
  %v27 = vld [vmem:[%s1 + $0x50] sm:$0xff]
  %v28 = vld [vmem:[%s1 + $0x58] sm:$0xff]
  %v29 = vld [vmem:[%s1 + $0x60] sm:$0xff]
  %v30 = vld [vmem:[%s1 + $0x68] sm:$0xff]
  %v31 = vld [vmem:[%s1 + $0x70] sm:$0xff]
  %v32 = vld [vmem:[%s1 + $0x78] sm:$0xff]
  %v33 = vld [vmem:[%s1 + $0x80] sm:$0xff]
  %v34 = vld [vmem:[%s1 + $0x88] sm:$0xff]
  %v35 = vld [vmem:[%s1 + $0x90] sm:$0xff]
  %v36 = vld [vmem:[%s1 + $0x98] sm:$0xff]
  %v37 = vld [vmem:[%s1 + $0xa0] sm:$0xff]
  %v38 = vld [vmem:[%s1 + $0xa8] sm:$0xff]
  %v39 = vld [vmem:[%s1 + $0xb0] sm:$0xff]
  %v40 = vld [vmem:[%s1 + $0xb8] sm:$0xff]
  %v41 = vld [vmem:[%s1 + $0xc0] sm:$0xff]
  %v42 = vld [vmem:[%s1 + $0xc8] sm:$0xff]
  %v43 = vld [vmem:[%s1 + $0xd0] sm:$0xff]
  %v44 = vld [vmem:[%s1 + $0xd8] sm:$0xff]
  %v45 = vld [vmem:[%s1 + $0xe0] sm:$0xff]
  %v46 = vld [vmem:[%s1 + $0xe8] sm:$0xff]
  %v47 = vld [vmem:[%s1 + $0xf0] sm:$0xff]
  %v48 = vld [vmem:[%s1 + $0xf8] sm:$0xff]
  %v49 = vld [vmem:[%s1 + $0x100] sm:$0xff]
  %v50 = vld [vmem:[%s1 + $0x108] sm:$0xff]
  %v51 = vld [vmem:[%s1 + $0x110] sm:$0xff]
  %v52 = vld [vmem:[%s1 + $0x118] sm:$0xff]
  %v53 = vld [vmem:[%s1 + $0x120] sm:$0xff]
  %v54 = vld [vmem:[%s1 + $0x128] sm:$0xff]
  %v55 = vld [vmem:[%s1 + $0x130] sm:$0xff]
  %v56 = vld [vmem:[%s1 + $0x138] sm:$0xff]
  %v57 = vld [vmem:[%s1 + $0x140] sm:$0xff]
  %v58 = vld [vmem:[%s1 + $0x148] sm:$0xff]
  %v59 = vld [vmem:[%s1 + $0x150] sm:$0xff]
  %v60 = vld [vmem:[%s1 + $0x158] sm:$0xff]
  %v61 = vld [vmem:[%s1 + $0x160] sm:$0xff]
  %v62 = vld [vmem:[%s1 + $0x168] sm:$0xff]
  %v63 = vld [vmem:[%s1 + $0x170] sm:$0xff]
  %v64 = vld [vmem:[%s1 + $0x178] sm:$0xff]
  %v65 = vld [vmem:[%s1 + $0x180] sm:$0xff]
  %v66 = vld [vmem:[%s1 + $0x188] sm:$0xff]
  %v67 = vld [vmem:[%s1 + $0x190] sm:$0xff]
  %v68 = vld [vmem:[%s1 + $0x198] sm:$0xff]
  %v69 = vld [vmem:[%s1 + $0x1a0] sm:$0xff]
  %v70 = vld [vmem:[%s1 + $0x1a8] sm:$0xff]
  %v71 = vld [vmem:[%s1 + $0x1b0] sm:$0xff]
  %v72 = vld [vmem:[%s1 + $0x1b8] sm:$0xff]
  %v73 = vld [vmem:[%s1 + $0x1c0] sm:$0xff]
  %v74 = vld [vmem:[%s1 + $0x1c8] sm:$0xff]
  %v75 = vld [vmem:[%s1 + $0x1d0] sm:$0xff]
  %v76 = vld [vmem:[%s1 + $0x1d8] sm:$0xff]
  %v77 = vld [vmem:[%s1 + $0x1e0] sm:$0xff]
  %v78 = vld [vmem:[%s1 + $0x1e8] sm:$0xff]
  %v79 = vld [vmem:[%s1 + $0x1f0] sm:$0xff]
  %v80 = vld [vmem:[%s1 + $0x1f8] sm:$0xff]
  %v81 = vld [vmem:[%s1 + $0x200] sm:$0xff]
  %v82 = vld [vmem:[%s1 + $0x208] sm:$0xff]
  %v83 = vld [vmem:[%s1 + $0x210] sm:$0xff]
  %v84 = vld [vmem:[%s1 + $0x218] sm:$0xff]
  %v85 = vld [vmem:[%s1 + $0x220] sm:$0xff]
  %v86 = vld [vmem:[%s1 + $0x228] sm:$0xff]
  %v87 = vld [vmem:[%s1 + $0x230] sm:$0xff]
  %v88 = vld [vmem:[%s1 + $0x238] sm:$0xff]
  %v89 = vld [vmem:[%s1 + $0x240] sm:$0xff]
  %v90 = vld [vmem:[%s1 + $0x248] sm:$0xff]
  %v91 = vld [vmem:[%s1 + $0x250] sm:$0xff]
  %v92 = vld [vmem:[%s1 + $0x258] sm:$0xff]
  %v93 = vld [vmem:[%s1 + $0x260] sm:$0xff]
  %v94 = vld [vmem:[%s1 + $0x268] sm:$0xff]
  %v95 = vld [vmem:[%s1 + $0x270] sm:$0xff]
  %v96 = vld [vmem:[%s1 + $0x278] sm:$0xff]
  %v97 = vld [vmem:[%s1 + $0x280] sm:$0xff]
  %v98 = vld [vmem:[%s1 + $0x288] sm:$0xff]
  %v99 = vld [vmem:[%s1 + $0x290] sm:$0xff]
  %v100 = vld [vmem:[%s1 + $0x298] sm:$0xff]
  %v101 = vld [vmem:[%s1 + $0x2a0] sm:$0xff]
  %v102 = vld [vmem:[%s1 + $0x2a8] sm:$0xff]
  %v103 = vld [vmem:[%s1 + $0x2b0] sm:$0xff]
  %v104 = vld [vmem:[%s1 + $0x2b8] sm:$0xff]
  %v105 = vld [vmem:[%s1 + $0x2c0] sm:$0xff]
  %v106 = vld [vmem:[%s1 + $0x2c8] sm:$0xff]
  %v107 = vld [vmem:[%s1 + $0x2d0] sm:$0xff]
  %v108 = vld [vmem:[%s1 + $0x2d8] sm:$0xff]
  %v109 = vld [vmem:[%s1 + $0x2e0] sm:$0xff]
  %v110 = vld [vmem:[%s1 + $0x2e8] sm:$0xff]
  %v111 = vld [vmem:[%s1 + $0x2f0] sm:$0xff]
  %v112 = vld [vmem:[%s1 + $0x2f8] sm:$0xff]
  %v113 = vld [vmem:[%s1 + $0x300] sm:$0xff]
  %v114 = vld [vmem:[%s1 + $0x308] sm:$0xff]
  %v115 = vld [vmem:[%s1 + $0x310] sm:$0xff]
  %v116 = vld [vmem:[%s1 + $0x318] sm:$0xff]
  %v117 = vld [vmem:[%s2] sm:$0xff]
  %119 = vset.pattern.permute.xlu0 0
  %120 = vperm.xlu0 %119, %v117
  %v121 = vpop.permute.xlu0 %120
  %v125 = vunpack.c.l.b16 %v15
  %v126 = vunpack.c.h.b16 %v15
  %v127 = vunpack.c.l.b16 %v16
  %v128 = vunpack.c.h.b16 %v16
  %v129 = vpack.c.b16 %v125, %v125
  %v130 = vpack.c.b16 %v126, %v126
  %v131 = vpack.c.b16 %v127, %v127
  %v132 = vpack.c.b16 %v128, %v128
  %v236 = vunpack.c.l.b16 %v17
  %v237 = vunpack.c.h.b16 %v17
  %v238 = vunpack.c.l.b16 %v18
  %v239 = vunpack.c.h.b16 %v18
  %v240 = vunpack.c.l.b16 %v19
  %v241 = vunpack.c.h.b16 %v19
  %v242 = vunpack.c.l.b16 %v20
  %v243 = vunpack.c.h.b16 %v20
  %v244 = vunpack.c.l.b16 %v21
  %v245 = vunpack.c.h.b16 %v21
  %v246 = vunpack.c.l.b16 %v22
  %v247 = vunpack.c.h.b16 %v22
  %v248 = vunpack.c.l.b16 %v23
  %v249 = vunpack.c.h.b16 %v23
  %v250 = vunpack.c.l.b16 %v24
  %v251 = vunpack.c.h.b16 %v24
  %v252 = vunpack.c.l.b16 %v25
  %v253 = vunpack.c.h.b16 %v25
  %v254 = vunpack.c.l.b16 %v26
  %v255 = vunpack.c.h.b16 %v26
  %v256 = vunpack.c.l.b16 %v27
  %v257 = vunpack.c.h.b16 %v27
  %v258 = vunpack.c.l.b16 %v28
  %v259 = vunpack.c.h.b16 %v28
  %v260 = vunpack.c.l.b16 %v29
  %v261 = vunpack.c.h.b16 %v29
  %v262 = vunpack.c.l.b16 %v30
  %v263 = vunpack.c.h.b16 %v30
  %v264 = vunpack.c.l.b16 %v31
  %v265 = vunpack.c.h.b16 %v31
  %v266 = vunpack.c.l.b16 %v32
  %v267 = vunpack.c.h.b16 %v32
  %v268 = vunpack.c.l.b16 %v33
  %v269 = vunpack.c.h.b16 %v33
  %v270 = vunpack.c.l.b16 %v34
  %v271 = vunpack.c.h.b16 %v34
  %v272 = vunpack.c.l.b16 %v35
  %v273 = vunpack.c.h.b16 %v35
  %v274 = vunpack.c.l.b16 %v36
  %v275 = vunpack.c.h.b16 %v36
  %v276 = vunpack.c.l.b16 %v37
  %v277 = vunpack.c.h.b16 %v37
  %v278 = vunpack.c.l.b16 %v38
  %v279 = vunpack.c.h.b16 %v38
  %v280 = vunpack.c.l.b16 %v39
  %v281 = vunpack.c.h.b16 %v39
  %v282 = vunpack.c.l.b16 %v40
  %v283 = vunpack.c.h.b16 %v40
  %v284 = vunpack.c.l.b16 %v41
  %v285 = vunpack.c.h.b16 %v41
  %v286 = vunpack.c.l.b16 %v42
  %v287 = vunpack.c.h.b16 %v42
  %v288 = vunpack.c.l.b16 %v43
  %v289 = vunpack.c.h.b16 %v43
  %v290 = vunpack.c.l.b16 %v44
  %v291 = vunpack.c.h.b16 %v44
  %v292 = vunpack.c.l.b16 %v45
  %v293 = vunpack.c.h.b16 %v45
  %v294 = vunpack.c.l.b16 %v46
  %v295 = vunpack.c.h.b16 %v46
  %v296 = vunpack.c.l.b16 %v47
  %v297 = vunpack.c.h.b16 %v47
  %v298 = vunpack.c.l.b16 %v48
  %v299 = vunpack.c.h.b16 %v48
  %v300 = vunpack.c.l.b16 %v49
  %v301 = vunpack.c.h.b16 %v49
  %v302 = vunpack.c.l.b16 %v50
  %v303 = vunpack.c.h.b16 %v50
  %v304 = vunpack.c.l.b16 %v51
  %v305 = vunpack.c.h.b16 %v51
  %v306 = vunpack.c.l.b16 %v52
  %v307 = vunpack.c.h.b16 %v52
  %v308 = vunpack.c.l.b16 %v53
  %v309 = vunpack.c.h.b16 %v53
  %v310 = vunpack.c.l.b16 %v54
  %v311 = vunpack.c.h.b16 %v54
  %v312 = vunpack.c.l.b16 %v55
  %v313 = vunpack.c.h.b16 %v55
  %v314 = vunpack.c.l.b16 %v56
  %v315 = vunpack.c.h.b16 %v56
  %v316 = vunpack.c.l.b16 %v57
  %v317 = vunpack.c.h.b16 %v57
  %v318 = vunpack.c.l.b16 %v58
  %v319 = vunpack.c.h.b16 %v58
  %v320 = vunpack.c.l.b16 %v59
  %v321 = vunpack.c.h.b16 %v59
  %v322 = vunpack.c.l.b16 %v60
  %v323 = vunpack.c.h.b16 %v60
  %v324 = vunpack.c.l.b16 %v61
  %v325 = vunpack.c.h.b16 %v61
  %v326 = vunpack.c.l.b16 %v62
  %v327 = vunpack.c.h.b16 %v62
  %v328 = vunpack.c.l.b16 %v63
  %v329 = vunpack.c.h.b16 %v63
  %v330 = vunpack.c.l.b16 %v64
  %v331 = vunpack.c.h.b16 %v64
  %v332 = vunpack.c.l.b16 %v65
  %v333 = vunpack.c.h.b16 %v65
  %v334 = vunpack.c.l.b16 %v66
  %v335 = vunpack.c.h.b16 %v66
  %v336 = vunpack.c.l.b16 %v67
  %v337 = vunpack.c.h.b16 %v67
  %v338 = vunpack.c.l.b16 %v68
  %v339 = vunpack.c.h.b16 %v68
  %v340 = vunpack.c.l.b16 %v69
  %v341 = vunpack.c.h.b16 %v69
  %v342 = vunpack.c.l.b16 %v70
  %v343 = vunpack.c.h.b16 %v70
  %v344 = vunpack.c.l.b16 %v71
  %v345 = vunpack.c.h.b16 %v71
  %v346 = vunpack.c.l.b16 %v72
  %v347 = vunpack.c.h.b16 %v72
  %v348 = vunpack.c.l.b16 %v73
  %v349 = vunpack.c.h.b16 %v73
  %v350 = vunpack.c.l.b16 %v74
  %v351 = vunpack.c.h.b16 %v74
  %v352 = vunpack.c.l.b16 %v75
  %v353 = vunpack.c.h.b16 %v75
  %v354 = vunpack.c.l.b16 %v76
  %v355 = vunpack.c.h.b16 %v76
  %v356 = vunpack.c.l.b16 %v77
  %v357 = vunpack.c.h.b16 %v77
  %v358 = vunpack.c.l.b16 %v78
  %v359 = vunpack.c.h.b16 %v78
  %v360 = vunpack.c.l.b16 %v79
  %v361 = vunpack.c.h.b16 %v79
  %v362 = vunpack.c.l.b16 %v80
  %v363 = vunpack.c.h.b16 %v80
  %v364 = vunpack.c.l.b16 %v81
  %v365 = vunpack.c.h.b16 %v81
  %v366 = vunpack.c.l.b16 %v82
  %v367 = vunpack.c.h.b16 %v82
  %v368 = vunpack.c.l.b16 %v83
  %v369 = vunpack.c.h.b16 %v83
  %v370 = vunpack.c.l.b16 %v84
  %v371 = vunpack.c.h.b16 %v84
  %v372 = vunpack.c.l.b16 %v85
  %v373 = vunpack.c.h.b16 %v85
  %v374 = vunpack.c.l.b16 %v86
  %v375 = vunpack.c.h.b16 %v86
  %v376 = vunpack.c.l.b16 %v87
  %v377 = vunpack.c.h.b16 %v87
  %v378 = vunpack.c.l.b16 %v88
  %v379 = vunpack.c.h.b16 %v88
  %v380 = vunpack.c.l.b16 %v89
  %v381 = vunpack.c.h.b16 %v89
  %v382 = vunpack.c.l.b16 %v90
  %v383 = vunpack.c.h.b16 %v90
  %v384 = vunpack.c.l.b16 %v91
  %v385 = vunpack.c.h.b16 %v91
  %v386 = vunpack.c.l.b16 %v92
  %v387 = vunpack.c.h.b16 %v92
  %v388 = vunpack.c.l.b16 %v93
  %v389 = vunpack.c.h.b16 %v93
  %v390 = vunpack.c.l.b16 %v94
  %v391 = vunpack.c.h.b16 %v94
  %v392 = vunpack.c.l.b16 %v95
  %v393 = vunpack.c.h.b16 %v95
  %v394 = vunpack.c.l.b16 %v96
  %v395 = vunpack.c.h.b16 %v96
  %v396 = vunpack.c.l.b16 %v97
  %v397 = vunpack.c.h.b16 %v97
  %v398 = vunpack.c.l.b16 %v98
  %v399 = vunpack.c.h.b16 %v98
  %v400 = vunpack.c.l.b16 %v99
  %v401 = vunpack.c.h.b16 %v99
  %v402 = vunpack.c.l.b16 %v100
  %v403 = vunpack.c.h.b16 %v100
  %v404 = vunpack.c.l.b16 %v101
  %v405 = vunpack.c.h.b16 %v101
  %v406 = vunpack.c.l.b16 %v102
  %v407 = vunpack.c.h.b16 %v102
  %v408 = vunpack.c.l.b16 %v103
  %v409 = vunpack.c.h.b16 %v103
  %v410 = vunpack.c.l.b16 %v104
  %v411 = vunpack.c.h.b16 %v104
  %v412 = vunpack.c.l.b16 %v105
  %v413 = vunpack.c.h.b16 %v105
  %v414 = vunpack.c.l.b16 %v106
  %v415 = vunpack.c.h.b16 %v106
  %v416 = vunpack.c.l.b16 %v107
  %v417 = vunpack.c.h.b16 %v107
  %v418 = vunpack.c.l.b16 %v108
  %v419 = vunpack.c.h.b16 %v108
  %v420 = vunpack.c.l.b16 %v109
  %v421 = vunpack.c.h.b16 %v109
  %v422 = vunpack.c.l.b16 %v110
  %v423 = vunpack.c.h.b16 %v110
  %v424 = vunpack.c.l.b16 %v111
  %v425 = vunpack.c.h.b16 %v111
  %v426 = vunpack.c.l.b16 %v112
  %v427 = vunpack.c.h.b16 %v112
  %v428 = vunpack.c.l.b16 %v113
  %v429 = vunpack.c.h.b16 %v113
  %v430 = vunpack.c.l.b16 %v114
  %v431 = vunpack.c.h.b16 %v114
  %v432 = vunpack.c.l.b16 %v115
  %v433 = vunpack.c.h.b16 %v115
  %v434 = vunpack.c.l.b16 %v116
  %v435 = vunpack.c.h.b16 %v116
  %v436 = vpack.c.b16 %v240, %v236
  %v437 = vpack.c.b16 %v241, %v237
  %v438 = vpack.c.b16 %v242, %v238
  %v439 = vpack.c.b16 %v243, %v239
  %v440 = vpack.c.b16 %v248, %v244
  %v441 = vpack.c.b16 %v249, %v245
  %v442 = vpack.c.b16 %v250, %v246
  %v443 = vpack.c.b16 %v251, %v247
  %v444 = vpack.c.b16 %v256, %v252
  %v445 = vpack.c.b16 %v257, %v253
  %v446 = vpack.c.b16 %v258, %v254
  %v447 = vpack.c.b16 %v259, %v255
  %v448 = vpack.c.b16 %v264, %v260
  %v449 = vpack.c.b16 %v265, %v261
  %v450 = vpack.c.b16 %v266, %v262
  %v451 = vpack.c.b16 %v267, %v263
  %v452 = vpack.c.b16 %v272, %v268
  %v453 = vpack.c.b16 %v273, %v269
  %v454 = vpack.c.b16 %v274, %v270
  %v455 = vpack.c.b16 %v275, %v271
  %v456 = vpack.c.b16 %v280, %v276
  %v457 = vpack.c.b16 %v281, %v277
  %v458 = vpack.c.b16 %v282, %v278
  %v459 = vpack.c.b16 %v283, %v279
  %v460 = vpack.c.b16 %v288, %v284
  %v461 = vpack.c.b16 %v289, %v285
  %v462 = vpack.c.b16 %v290, %v286
  %v463 = vpack.c.b16 %v291, %v287
  %v464 = vpack.c.b16 %v296, %v292
  %v465 = vpack.c.b16 %v297, %v293
  %v466 = vpack.c.b16 %v298, %v294
  %v467 = vpack.c.b16 %v299, %v295
  %v468 = vpack.c.b16 %v304, %v300
  %v469 = vpack.c.b16 %v305, %v301
  %v470 = vpack.c.b16 %v306, %v302
  %v471 = vpack.c.b16 %v307, %v303
  %v472 = vpack.c.b16 %v312, %v308
  %v473 = vpack.c.b16 %v313, %v309
  %v474 = vpack.c.b16 %v314, %v310
  %v475 = vpack.c.b16 %v315, %v311
  %v476 = vpack.c.b16 %v320, %v316
  %v477 = vpack.c.b16 %v321, %v317
  %v478 = vpack.c.b16 %v322, %v318
  %v479 = vpack.c.b16 %v323, %v319
  %v480 = vpack.c.b16 %v328, %v324
  %v481 = vpack.c.b16 %v329, %v325
  %v482 = vpack.c.b16 %v330, %v326
  %v483 = vpack.c.b16 %v331, %v327
  %v484 = vpack.c.b16 %v336, %v332
  %v485 = vpack.c.b16 %v337, %v333
  %v486 = vpack.c.b16 %v338, %v334
  %v487 = vpack.c.b16 %v339, %v335
  %v488 = vpack.c.b16 %v344, %v340
  %v489 = vpack.c.b16 %v345, %v341
  %v490 = vpack.c.b16 %v346, %v342
  %v491 = vpack.c.b16 %v347, %v343
  %v492 = vpack.c.b16 %v352, %v348
  %v493 = vpack.c.b16 %v353, %v349
  %v494 = vpack.c.b16 %v354, %v350
  %v495 = vpack.c.b16 %v355, %v351
  %v496 = vpack.c.b16 %v360, %v356
  %v497 = vpack.c.b16 %v361, %v357
  %v498 = vpack.c.b16 %v362, %v358
  %v499 = vpack.c.b16 %v363, %v359
  %v500 = vpack.c.b16 %v368, %v364
  %v501 = vpack.c.b16 %v369, %v365
  %v502 = vpack.c.b16 %v370, %v366
  %v503 = vpack.c.b16 %v371, %v367
  %v504 = vpack.c.b16 %v376, %v372
  %v505 = vpack.c.b16 %v377, %v373
  %v506 = vpack.c.b16 %v378, %v374
  %v507 = vpack.c.b16 %v379, %v375
  %v508 = vpack.c.b16 %v384, %v380
  %v509 = vpack.c.b16 %v385, %v381
  %v510 = vpack.c.b16 %v386, %v382
  %v511 = vpack.c.b16 %v387, %v383
  %v512 = vpack.c.b16 %v392, %v388
  %v513 = vpack.c.b16 %v393, %v389
  %v514 = vpack.c.b16 %v394, %v390
  %v515 = vpack.c.b16 %v395, %v391
  %v516 = vpack.c.b16 %v400, %v396
  %v517 = vpack.c.b16 %v401, %v397
  %v518 = vpack.c.b16 %v402, %v398
  %v519 = vpack.c.b16 %v403, %v399
  %v520 = vpack.c.b16 %v408, %v404
  %v521 = vpack.c.b16 %v409, %v405
  %v522 = vpack.c.b16 %v410, %v406
  %v523 = vpack.c.b16 %v411, %v407
  %v524 = vpack.c.b16 %v416, %v412
  %v525 = vpack.c.b16 %v417, %v413
  %v526 = vpack.c.b16 %v418, %v414
  %v527 = vpack.c.b16 %v419, %v415
  %v528 = vpack.c.b16 %v424, %v420
  %v529 = vpack.c.b16 %v425, %v421
  %v530 = vpack.c.b16 %v426, %v422
  %v531 = vpack.c.b16 %v427, %v423
  %v532 = vpack.c.b16 %v432, %v428
  %v533 = vpack.c.b16 %v433, %v429
  %v534 = vpack.c.b16 %v434, %v430
  %v535 = vpack.c.b16 %v435, %v431
  %vm636 = vcmask 130048
  %v638 = vsel %vm636, %v132, 0
  %640 = vmatprep.subr.bf16.mxu0 %v437
  %641 = vmatpush1.bf16.msra.mxu0 %v436
  %642 = vmatprep.subr.bf16.mxu0 %v441
  %643 = vmatpush1.bf16.msra.mxu0 %v440
  %644 = vmatprep.subr.bf16.mxu0 %v445
  %645 = vmatpush1.bf16.msra.mxu0 %v444
  %646 = vmatprep.subr.bf16.mxu0 %v449
  %647 = vmatpush1.bf16.msra.mxu0 %v448
  %648 = vmatprep.subr.bf16.mxu0 %v453
  %649 = vmatpush1.bf16.msra.mxu0 %v452
  %650 = vmatprep.subr.bf16.mxu0 %v457
  %651 = vmatpush1.bf16.msra.mxu0 %v456
  %652 = vmatprep.subr.bf16.mxu0 %v461
  %653 = vmatpush1.bf16.msra.mxu0 %v460
  %654 = vmatprep.subr.bf16.mxu0 %v465
  %655 = vmatpush1.bf16.msra.mxu0 %v464
  %656 = vmatprep.subr.bf16.mxu0 %v469
  %657 = vmatpush1.bf16.msra.mxu0 %v468
  %658 = vmatprep.subr.bf16.mxu0 %v473
  %659 = vmatpush1.bf16.msra.mxu0 %v472
  %660 = vmatprep.subr.bf16.mxu0 %v477
  %661 = vmatpush1.bf16.msra.mxu0 %v476
  %662 = vmatprep.subr.bf16.mxu0 %v481
  %663 = vmatpush1.bf16.msra.mxu0 %v480
  %664 = vmatprep.subr.bf16.mxu0 %v485
  %665 = vmatpush1.bf16.msra.mxu0 %v484
  %666 = vmatprep.subr.bf16.mxu0 %v489
  %667 = vmatpush1.bf16.msra.mxu0 %v488
  %668 = vmatprep.subr.bf16.mxu0 %v493
  %669 = vmatpush1.bf16.msra.mxu0 %v492
  %670 = vmatprep.subr.bf16.mxu0 %v497
  %671 = vmatpush1.bf16.msra.mxu0 %v496
  %672 = vmatprep.mubr.bf16.mxu0 %v130
  %673 = vmatmul.mubr.bf16.gmra.mrb[0].mxu0 %v129
  %v674 = vpop.f32.mrb[0].mxu0
  %v675 = vadd.f32 %v121, %v674
  %v676 = vpop.f32.mrb[0].mxu0
  %v677 = vadd.f32 %v121, %v676
  %v678 = vpop.f32.mrb[0].mxu0
  %v679 = vpop.f32.mrb[0].mxu0
  %680 = vdwg.mxu0
  %681 = vmatprep.subr.bf16.mxu0 %v501
  %682 = vmatpush1.bf16.msra.mxu0 %v500
  %683 = vmatprep.subr.bf16.mxu0 %v505
  %684 = vmatpush1.bf16.msra.mxu0 %v504
  %685 = vmatprep.subr.bf16.mxu0 %v509
  %686 = vmatpush1.bf16.msra.mxu0 %v508
  %687 = vmatprep.subr.bf16.mxu0 %v513
  %688 = vmatpush1.bf16.msra.mxu0 %v512
  %689 = vmatprep.subr.bf16.mxu0 %v517
  %690 = vmatpush1.bf16.msra.mxu0 %v516
  %691 = vmatprep.subr.bf16.mxu0 %v521
  %692 = vmatpush1.bf16.msra.mxu0 %v520
  %693 = vmatprep.subr.bf16.mxu0 %v525
  %694 = vmatpush1.bf16.msra.mxu0 %v524
  %695 = vmatprep.subr.bf16.mxu0 %v529
  %696 = vmatpush1.bf16.msra.mxu0 %v528
  %697 = vmatprep.subr.bf16.mxu0 %v533
  %698 = vmatpush1.bf16.msra.mxu0 %v532
  %699 = vmatprep.subr.bf16.mxu0 0
  %700 = vmatpush1.bf16.msra.mxu0 0
  %701 = vmatprep.subr.bf16.mxu0 0
  %702 = vmatpush1.bf16.msra.mxu0 0
  %703 = vmatprep.subr.bf16.mxu0 0
  %704 = vmatpush1.bf16.msra.mxu0 0
  %705 = vmatprep.subr.bf16.mxu0 0
  %706 = vmatpush1.bf16.msra.mxu0 0
  %707 = vmatprep.subr.bf16.mxu0 0
  %708 = vmatpush1.bf16.msra.mxu0 0
  %709 = vmatprep.subr.bf16.mxu0 0
  %710 = vmatpush1.bf16.msra.mxu0 0
  %711 = vmatprep.subr.bf16.mxu0 0
  %712 = vmatpush1.bf16.msra.mxu0 0
  %713 = vmatprep.mubr.bf16.mxu0 %v638
  %714 = vmatmul.mubr.bf16.gmra.mrb[0].mxu0 %v131
  %v715 = vpop.f32.mrb[0].mxu0
  %v716 = vadd.f32 %v675, %v715
  %v717 = vpop.f32.mrb[0].mxu0
  %v718 = vadd.f32 %v677, %v717
  %v719 = vpop.f32.mrb[0].mxu0
  %v720 = vpop.f32.mrb[0].mxu0
  %721 = vdwg.mxu0
  %722 = vmatprep.subr.bf16.mxu0 %v439
  %723 = vmatpush1.bf16.msra.mxu0 %v438
  %724 = vmatprep.subr.bf16.mxu0 %v443
  %725 = vmatpush1.bf16.msra.mxu0 %v442
  %726 = vmatprep.subr.bf16.mxu0 %v447
  %727 = vmatpush1.bf16.msra.mxu0 %v446
  %728 = vmatprep.subr.bf16.mxu0 %v451
  %729 = vmatpush1.bf16.msra.mxu0 %v450
  %730 = vmatprep.subr.bf16.mxu0 %v455
  %731 = vmatpush1.bf16.msra.mxu0 %v454
  %732 = vmatprep.subr.bf16.mxu0 %v459
  %733 = vmatpush1.bf16.msra.mxu0 %v458
  %734 = vmatprep.subr.bf16.mxu0 %v463
  %735 = vmatpush1.bf16.msra.mxu0 %v462
  %736 = vmatprep.subr.bf16.mxu0 %v467
  %737 = vmatpush1.bf16.msra.mxu0 %v466
  %738 = vmatprep.subr.bf16.mxu0 %v471
  %739 = vmatpush1.bf16.msra.mxu0 %v470
  %740 = vmatprep.subr.bf16.mxu0 %v475
  %741 = vmatpush1.bf16.msra.mxu0 %v474
  %742 = vmatprep.subr.bf16.mxu0 %v479
  %743 = vmatpush1.bf16.msra.mxu0 %v478
  %744 = vmatprep.subr.bf16.mxu0 %v483
  %745 = vmatpush1.bf16.msra.mxu0 %v482
  %746 = vmatprep.subr.bf16.mxu0 %v487
  %747 = vmatpush1.bf16.msra.mxu0 %v486
  %748 = vmatprep.subr.bf16.mxu0 %v491
  %749 = vmatpush1.bf16.msra.mxu0 %v490
  %750 = vmatprep.subr.bf16.mxu0 %v495
  %751 = vmatpush1.bf16.msra.mxu0 %v494
  %752 = vmatprep.subr.bf16.mxu0 %v499
  %753 = vmatpush1.bf16.msra.mxu0 %v498
  %754 = vmatprep.mubr.bf16.mxu0 %v130
  %755 = vmatmul.mubr.bf16.gmra.mrb[0].mxu0 %v129
  %v756 = vpop.f32.mrb[0].mxu0
  %v757 = vadd.f32 %v121, %v756
  %v758 = vpop.f32.mrb[0].mxu0
  %v759 = vadd.f32 %v121, %v758
  %v760 = vpop.f32.mrb[0].mxu0
  %v761 = vpop.f32.mrb[0].mxu0
  %762 = vdwg.mxu0
  %763 = vmatprep.subr.bf16.mxu0 %v503
  %764 = vmatpush1.bf16.msra.mxu0 %v502
  %765 = vmatprep.subr.bf16.mxu0 %v507
  %766 = vmatpush1.bf16.msra.mxu0 %v506
  %767 = vmatprep.subr.bf16.mxu0 %v511
  %768 = vmatpush1.bf16.msra.mxu0 %v510
  %769 = vmatprep.subr.bf16.mxu0 %v515
  %770 = vmatpush1.bf16.msra.mxu0 %v514
  %771 = vmatprep.subr.bf16.mxu0 %v519
  %772 = vmatpush1.bf16.msra.mxu0 %v518
  %773 = vmatprep.subr.bf16.mxu0 %v523
  %774 = vmatpush1.bf16.msra.mxu0 %v522
  %775 = vmatprep.subr.bf16.mxu0 %v527
  %776 = vmatpush1.bf16.msra.mxu0 %v526
  %777 = vmatprep.subr.bf16.mxu0 %v531
  %778 = vmatpush1.bf16.msra.mxu0 %v530
  %779 = vmatprep.subr.bf16.mxu0 %v535
  %780 = vmatpush1.bf16.msra.mxu0 %v534
  %781 = vmatprep.subr.bf16.mxu0 0
  %782 = vmatpush1.bf16.msra.mxu0 0
  %783 = vmatprep.subr.bf16.mxu0 0
  %784 = vmatpush1.bf16.msra.mxu0 0
  %785 = vmatprep.subr.bf16.mxu0 0
  %786 = vmatpush1.bf16.msra.mxu0 0
  %787 = vmatprep.subr.bf16.mxu0 0
  %788 = vmatpush1.bf16.msra.mxu0 0
  %789 = vmatprep.subr.bf16.mxu0 0
  %790 = vmatpush1.bf16.msra.mxu0 0
  %791 = vmatprep.subr.bf16.mxu0 0
  %792 = vmatpush1.bf16.msra.mxu0 0
  %793 = vmatprep.subr.bf16.mxu0 0
  %794 = vmatpush1.bf16.msra.mxu0 0
  %795 = vmatprep.mubr.bf16.mxu0 %v638
  %796 = vmatmul.mubr.bf16.gmra.mrb[0].mxu0 %v131
  %v797 = vpop.f32.mrb[0].mxu0
  %v798 = vadd.f32 %v757, %v797
  %v799 = vpop.f32.mrb[0].mxu0
  %v800 = vadd.f32 %v759, %v799
  %v801 = vpop.f32.mrb[0].mxu0
  %v802 = vpop.f32.mrb[0].mxu0
  %803 = vdwg.mxu0
  %v804 = vmax.f32 %v716, 0.0
  %v805 = vmax.f32 %v718, 0.0
  %v806 = vmax.f32 %v798, 0.0
  %v807 = vmax.f32 %v800, 0.0
  %808 = vst [vmem:[%s3] sm:$0xff] %v804
  %809 = vst [vmem:[%s3 + $0x8] sm:$0xff] %v805
  %810 = vst [vmem:[%s3 + $0x10] sm:$0xff] %v806
  %vm811 = vcmask 539648
  %812 = vst.msk [vmem:[%s3 + $0x18] sm:$0xff] %vm811, %v807
  // Predicated region
  $region14: #{cae_forward.12} parent=0 // pred_check
    _
  $region15: #{cae_forward.12} parent=0 // pred_check_branch
    %814 = sbr.rel (0) target = $region17
  $region16: #{cae_forward.12} parent=0 // pred_region
    _
  $region17: #{cae_forward.12} parent=0 // pred_fallthru
    _
  // Predicated region
  $region18: #{cae_forward.12} parent=0 // pred_check
    _
  $region19: #{cae_forward.12} parent=0 // pred_check_branch
    %816 = sbr.rel (0) target = $region21
  $region20: #{cae_forward.12} parent=0 // pred_region
    _
  $region21: #{cae_forward.12} parent=0 // pred_fallthru
    _

// kernel: cae_forward.13
$region0: #{cae_forward.13}
  #allocation0 [shape = 'u32[]', space=smem, size = 0x4, offset = 0x4, fixed_abs, tag = 'smem constant byte address 0x4 - core index']
  #allocation1 [shape = 'u32[144,128]{1,0:T(1,128)}', space=vmem, size = 0x12000, scoped, tag = 'internal scratch']
  #allocation2 [shape = 'f32[1,1]{1,0:T(1,128)S(1)}', space=vmem, size = 0x200, scoped, tag = 'scoped memory for cae_forward.13']
  %s0 = inlined_call_operand.vmem [shape: bf16[1,32], index: 0, kind: input, shape index: {}]
  %s1 = inlined_call_operand.vmem [shape: bf16[32,1568], index: 1, kind: input, shape index: {}]
  %s2 = inlined_call_operand.<no memory space> [shape: f32[1,1], index: 2, kind: input, shape index: {}]
  %s3 = inlined_call_operand.vmem [shape: f32[1,1568], index: 3, kind: output, shape index: {}]
  %s4 = sld [smem:[#allocation0]]
  $region22: #{cae_forward.13} parent=0
    _
  %s6 = ssub.s32 1, %s4
  %s7 = scalar_select 0, %s6, %s4
  %v8 = vstv %s2
  %9 = vst [vmem:[#allocation2] sm:$0x1] %v8
  // Predicated region
  $region2: #{cae_forward.13} parent=0 // pred_check
    _
  $region3: #{cae_forward.13} parent=0 // pred_check_branch
    %11 = sbr.rel (0) target = $region5
  $region4: #{cae_forward.13} parent=0 // pred_region
    _
  $region5: #{cae_forward.13} parent=0 // pred_fallthru
    _
  // Predicated region
  $region6: #{cae_forward.13} parent=0 // pred_check
    _
  $region7: #{cae_forward.13} parent=0 // pred_check_branch
    %13 = sbr.rel (0) target = $region9
  $region8: #{cae_forward.13} parent=0 // pred_region
    _
  $region9: #{cae_forward.13} parent=0 // pred_fallthru
    _
  // Predicated region
  $region10: #{cae_forward.13} parent=0 // pred_check
    _
  $region11: #{cae_forward.13} parent=0 // pred_check_branch
    %15 = sbr.rel (0) target = $region13
  $region12: #{cae_forward.13} parent=0 // pred_region
    _
  $region13: #{cae_forward.13} parent=0 // pred_fallthru
    _
  %v17 = vld [vmem:[%s0] sm:$0x1]
  %v18 = vld [vmem:[%s1] sm:$0xff]
  %v19 = vld [vmem:[%s1 + $0x8] sm:$0xff]
  %v20 = vld [vmem:[%s1 + $0x10] sm:$0xff]
  %v21 = vld [vmem:[%s1 + $0x18] sm:$0xff]
  %v22 = vld [vmem:[%s1 + $0x20] sm:$0xff]
  %v23 = vld [vmem:[%s1 + $0x28] sm:$0xff]
  %v24 = vld [vmem:[%s1 + $0x30] sm:$0xf]
  %v25 = vld [vmem:[%s1 + $0x34] sm:$0xff]
  %v26 = vld [vmem:[%s1 + $0x3c] sm:$0xff]
  %v27 = vld [vmem:[%s1 + $0x44] sm:$0xff]
  %v28 = vld [vmem:[%s1 + $0x4c] sm:$0xff]
  %v29 = vld [vmem:[%s1 + $0x54] sm:$0xff]
  %v30 = vld [vmem:[%s1 + $0x5c] sm:$0xff]
  %v31 = vld [vmem:[%s1 + $0x64] sm:$0xf]
  %v32 = vld [vmem:[%s1 + $0x68] sm:$0xff]
  %v33 = vld [vmem:[%s1 + $0x70] sm:$0xff]
  %v34 = vld [vmem:[%s1 + $0x78] sm:$0xff]
  %v35 = vld [vmem:[%s1 + $0x80] sm:$0xff]
  %v36 = vld [vmem:[%s1 + $0x88] sm:$0xff]
  %v37 = vld [vmem:[%s1 + $0x90] sm:$0xff]
  %v38 = vld [vmem:[%s1 + $0x98] sm:$0xf]
  %v39 = vld [vmem:[%s1 + $0x9c] sm:$0xff]
  %v40 = vld [vmem:[%s1 + $0xa4] sm:$0xff]
  %v41 = vld [vmem:[%s1 + $0xac] sm:$0xff]
  %v42 = vld [vmem:[%s1 + $0xb4] sm:$0xff]
  %v43 = vld [vmem:[%s1 + $0xbc] sm:$0xff]
  %v44 = vld [vmem:[%s1 + $0xc4] sm:$0xff]
  %v45 = vld [vmem:[%s1 + $0xcc] sm:$0xf]
  %v46 = vld [vmem:[#allocation2] sm:$0x1]
  %48 = vset.pattern.permute.xlu0 0
  %49 = vperm.xlu0 %48, %v46
  %v50 = vpop.permute.xlu0 %49
  %v52 = vlaneseq
  %v53 = vshrl.u32 %v52, 7
  %v54 = vsub.s32 0, %v53
  %v55 = vrot.slane %v50, %v54
  %v84 = vunpack.c.l.b16 %v18
  %v85 = vunpack.c.h.b16 %v18
  %v86 = vunpack.c.l.b16 %v19
  %v87 = vunpack.c.h.b16 %v19
  %v88 = vunpack.c.l.b16 %v20
  %v89 = vunpack.c.h.b16 %v20
  %v90 = vunpack.c.l.b16 %v21
  %v91 = vunpack.c.h.b16 %v21
  %v92 = vunpack.c.l.b16 %v22
  %v93 = vunpack.c.h.b16 %v22
  %v94 = vunpack.c.l.b16 %v23
  %v95 = vunpack.c.h.b16 %v23
  %v96 = vunpack.c.l.b16 %v24
  %v97 = vunpack.c.l.b16 %v25
  %v98 = vunpack.c.h.b16 %v25
  %v99 = vunpack.c.l.b16 %v26
  %v100 = vunpack.c.h.b16 %v26
  %v101 = vunpack.c.l.b16 %v27
  %v102 = vunpack.c.h.b16 %v27
  %v103 = vunpack.c.l.b16 %v28
  %v104 = vunpack.c.h.b16 %v28
  %v105 = vunpack.c.l.b16 %v29
  %v106 = vunpack.c.h.b16 %v29
  %v107 = vunpack.c.l.b16 %v30
  %v108 = vunpack.c.h.b16 %v30
  %v109 = vunpack.c.l.b16 %v31
  %v110 = vunpack.c.l.b16 %v32
  %v111 = vunpack.c.h.b16 %v32
  %v112 = vunpack.c.l.b16 %v33
  %v113 = vunpack.c.h.b16 %v33
  %v114 = vunpack.c.l.b16 %v34
  %v115 = vunpack.c.h.b16 %v34
  %v116 = vunpack.c.l.b16 %v35
  %v117 = vunpack.c.h.b16 %v35
  %v118 = vunpack.c.l.b16 %v36
  %v119 = vunpack.c.h.b16 %v36
  %v120 = vunpack.c.l.b16 %v37
  %v121 = vunpack.c.h.b16 %v37
  %v122 = vunpack.c.l.b16 %v38
  %v123 = vunpack.c.l.b16 %v39
  %v124 = vunpack.c.h.b16 %v39
  %v125 = vunpack.c.l.b16 %v40
  %v126 = vunpack.c.h.b16 %v40
  %v127 = vunpack.c.l.b16 %v41
  %v128 = vunpack.c.h.b16 %v41
  %v129 = vunpack.c.l.b16 %v42
  %v130 = vunpack.c.h.b16 %v42
  %v131 = vunpack.c.l.b16 %v43
  %v132 = vunpack.c.h.b16 %v43
  %v133 = vunpack.c.l.b16 %v44
  %v134 = vunpack.c.h.b16 %v44
  %v135 = vunpack.c.l.b16 %v45
  %v136 = vpack.c.b16 %v97, %v84
  %v137 = vpack.c.b16 %v98, %v85
  %v138 = vpack.c.b16 %v99, %v86
  %v139 = vpack.c.b16 %v100, %v87
  %v140 = vpack.c.b16 %v101, %v88
  %v141 = vpack.c.b16 %v102, %v89
  %v142 = vpack.c.b16 %v103, %v90
  %v143 = vpack.c.b16 %v104, %v91
  %v144 = vpack.c.b16 %v105, %v92
  %v145 = vpack.c.b16 %v106, %v93
  %v146 = vpack.c.b16 %v107, %v94
  %v147 = vpack.c.b16 %v108, %v95
  %v148 = vpack.c.b16 %v109, %v96
  %v149 = vpack.c.b16 %v123, %v110
  %v150 = vpack.c.b16 %v124, %v111
  %v151 = vpack.c.b16 %v125, %v112
  %v152 = vpack.c.b16 %v126, %v113
  %v153 = vpack.c.b16 %v127, %v114
  %v154 = vpack.c.b16 %v128, %v115
  %v155 = vpack.c.b16 %v129, %v116
  %v156 = vpack.c.b16 %v130, %v117
  %v157 = vpack.c.b16 %v131, %v118
  %v158 = vpack.c.b16 %v132, %v119
  %v159 = vpack.c.b16 %v133, %v120
  %v160 = vpack.c.b16 %v134, %v121
  %v161 = vpack.c.b16 %v135, %v122
  %vm188 = vcmask 261120
  %v190 = vsel %vm188, %v17, 0
  %192 = vmatprep.subr.bf16.mxu0 %v137
  %193 = vmatpush1.bf16.msra.mxu0 %v136
  %194 = vmatprep.subr.bf16.mxu0 %v150
  %195 = vmatpush1.bf16.msra.mxu0 %v149
  %196 = vmatprep.subr.bf16.mxu0 0
  %197 = vmatpush1.bf16.msra.mxu0 0
  %198 = vmatprep.subr.bf16.mxu0 0
  %199 = vmatpush1.bf16.msra.mxu0 0
  %200 = vmatprep.subr.bf16.mxu0 0
  %201 = vmatpush1.bf16.msra.mxu0 0
  %202 = vmatprep.subr.bf16.mxu0 0
  %203 = vmatpush1.bf16.msra.mxu0 0
  %204 = vmatprep.subr.bf16.mxu0 0
  %205 = vmatpush1.bf16.msra.mxu0 0
  %206 = vmatprep.subr.bf16.mxu0 0
  %207 = vmatpush1.bf16.msra.mxu0 0
  %208 = vmatprep.subr.bf16.mxu0 0
  %209 = vmatpush1.bf16.msra.mxu0 0
  %210 = vmatprep.subr.bf16.mxu0 0
  %211 = vmatpush1.bf16.msra.mxu0 0
  %212 = vmatprep.subr.bf16.mxu0 0
  %213 = vmatpush1.bf16.msra.mxu0 0
  %214 = vmatprep.subr.bf16.mxu0 0
  %215 = vmatpush1.bf16.msra.mxu0 0
  %216 = vmatprep.subr.bf16.mxu0 0
  %217 = vmatpush1.bf16.msra.mxu0 0
  %218 = vmatprep.subr.bf16.mxu0 0
  %219 = vmatpush1.bf16.msra.mxu0 0
  %220 = vmatprep.subr.bf16.mxu0 0
  %221 = vmatpush1.bf16.msra.mxu0 0
  %222 = vmatprep.subr.bf16.mxu0 0
  %223 = vmatpush1.bf16.msra.mxu0 0
  %224 = vmatprep.mubr.bf16.mxu0 0
  %225 = vmatmul.mubr.bf16.gmra.mrb[0].mxu0 %v190
  %v226 = vpop.f32.mrb[0].mxu0
  %v227 = vadd.f32 %v55, %v226
  %v228 = vpop.f32.mrb[0].mxu0
  %v229 = vadd.f32 %v55, %v228
  %v230 = vpop.f32.mrb[0].mxu0
  %v231 = vpop.f32.mrb[0].mxu0
  %232 = vdwg.mxu0
  %233 = vmatprep.subr.bf16.mxu0 %v139
  %234 = vmatpush1.bf16.msra.mxu0 %v138
  %235 = vmatprep.subr.bf16.mxu0 %v152
  %236 = vmatpush1.bf16.msra.mxu0 %v151
  %237 = vmatprep.subr.bf16.mxu0 0
  %238 = vmatpush1.bf16.msra.mxu0 0
  %239 = vmatprep.subr.bf16.mxu0 0
  %240 = vmatpush1.bf16.msra.mxu0 0
  %241 = vmatprep.subr.bf16.mxu0 0
  %242 = vmatpush1.bf16.msra.mxu0 0
  %243 = vmatprep.subr.bf16.mxu0 0
  %244 = vmatpush1.bf16.msra.mxu0 0
  %245 = vmatprep.subr.bf16.mxu0 0
  %246 = vmatpush1.bf16.msra.mxu0 0
  %247 = vmatprep.subr.bf16.mxu0 0
  %248 = vmatpush1.bf16.msra.mxu0 0
  %249 = vmatprep.subr.bf16.mxu0 0
  %250 = vmatpush1.bf16.msra.mxu0 0
  %251 = vmatprep.subr.bf16.mxu0 0
  %252 = vmatpush1.bf16.msra.mxu0 0
  %253 = vmatprep.subr.bf16.mxu0 0
  %254 = vmatpush1.bf16.msra.mxu0 0
  %255 = vmatprep.subr.bf16.mxu0 0
  %256 = vmatpush1.bf16.msra.mxu0 0
  %257 = vmatprep.subr.bf16.mxu0 0
  %258 = vmatpush1.bf16.msra.mxu0 0
  %259 = vmatprep.subr.bf16.mxu0 0
  %260 = vmatpush1.bf16.msra.mxu0 0
  %261 = vmatprep.subr.bf16.mxu0 0
  %262 = vmatpush1.bf16.msra.mxu0 0
  %263 = vmatprep.subr.bf16.mxu0 0
  %264 = vmatpush1.bf16.msra.mxu0 0
  %265 = vmatprep.mubr.bf16.mxu0 0
  %266 = vmatmul.mubr.bf16.gmra.mrb[0].mxu0 %v190
  %v267 = vpop.f32.mrb[0].mxu0
  %v268 = vadd.f32 %v55, %v267
  %v269 = vpop.f32.mrb[0].mxu0
  %v270 = vadd.f32 %v55, %v269
  %v271 = vpop.f32.mrb[0].mxu0
  %v272 = vpop.f32.mrb[0].mxu0
  %273 = vdwg.mxu0
  %274 = vmatprep.subr.bf16.mxu0 %v141
  %275 = vmatpush1.bf16.msra.mxu0 %v140
  %276 = vmatprep.subr.bf16.mxu0 %v154
  %277 = vmatpush1.bf16.msra.mxu0 %v153
  %278 = vmatprep.subr.bf16.mxu0 0
  %279 = vmatpush1.bf16.msra.mxu0 0
  %280 = vmatprep.subr.bf16.mxu0 0
  %281 = vmatpush1.bf16.msra.mxu0 0
  %282 = vmatprep.subr.bf16.mxu0 0
  %283 = vmatpush1.bf16.msra.mxu0 0
  %284 = vmatprep.subr.bf16.mxu0 0
  %285 = vmatpush1.bf16.msra.mxu0 0
  %286 = vmatprep.subr.bf16.mxu0 0
  %287 = vmatpush1.bf16.msra.mxu0 0
  %288 = vmatprep.subr.bf16.mxu0 0
  %289 = vmatpush1.bf16.msra.mxu0 0
  %290 = vmatprep.subr.bf16.mxu0 0
  %291 = vmatpush1.bf16.msra.mxu0 0
  %292 = vmatprep.subr.bf16.mxu0 0
  %293 = vmatpush1.bf16.msra.mxu0 0
  %294 = vmatprep.subr.bf16.mxu0 0
  %295 = vmatpush1.bf16.msra.mxu0 0
  %296 = vmatprep.subr.bf16.mxu0 0
  %297 = vmatpush1.bf16.msra.mxu0 0
  %298 = vmatprep.subr.bf16.mxu0 0
  %299 = vmatpush1.bf16.msra.mxu0 0
  %300 = vmatprep.subr.bf16.mxu0 0
  %301 = vmatpush1.bf16.msra.mxu0 0
  %302 = vmatprep.subr.bf16.mxu0 0
  %303 = vmatpush1.bf16.msra.mxu0 0
  %304 = vmatprep.subr.bf16.mxu0 0
  %305 = vmatpush1.bf16.msra.mxu0 0
  %306 = vmatprep.mubr.bf16.mxu0 0
  %307 = vmatmul.mubr.bf16.gmra.mrb[0].mxu0 %v190
  %v308 = vpop.f32.mrb[0].mxu0
  %v309 = vadd.f32 %v55, %v308
  %v310 = vpop.f32.mrb[0].mxu0
  %v311 = vadd.f32 %v55, %v310
  %v312 = vpop.f32.mrb[0].mxu0
  %v313 = vpop.f32.mrb[0].mxu0
  %314 = vdwg.mxu0
  %315 = vmatprep.subr.bf16.mxu0 %v143
  %316 = vmatpush1.bf16.msra.mxu0 %v142
  %317 = vmatprep.subr.bf16.mxu0 %v156
  %318 = vmatpush1.bf16.msra.mxu0 %v155
  %319 = vmatprep.subr.bf16.mxu0 0
  %320 = vmatpush1.bf16.msra.mxu0 0
  %321 = vmatprep.subr.bf16.mxu0 0
  %322 = vmatpush1.bf16.msra.mxu0 0
  %323 = vmatprep.subr.bf16.mxu0 0
  %324 = vmatpush1.bf16.msra.mxu0 0
  %325 = vmatprep.subr.bf16.mxu0 0
  %326 = vmatpush1.bf16.msra.mxu0 0
  %327 = vmatprep.subr.bf16.mxu0 0
  %328 = vmatpush1.bf16.msra.mxu0 0
  %329 = vmatprep.subr.bf16.mxu0 0
  %330 = vmatpush1.bf16.msra.mxu0 0
  %331 = vmatprep.subr.bf16.mxu0 0
  %332 = vmatpush1.bf16.msra.mxu0 0
  %333 = vmatprep.subr.bf16.mxu0 0
  %334 = vmatpush1.bf16.msra.mxu0 0
  %335 = vmatprep.subr.bf16.mxu0 0
  %336 = vmatpush1.bf16.msra.mxu0 0
  %337 = vmatprep.subr.bf16.mxu0 0
  %338 = vmatpush1.bf16.msra.mxu0 0
  %339 = vmatprep.subr.bf16.mxu0 0
  %340 = vmatpush1.bf16.msra.mxu0 0
  %341 = vmatprep.subr.bf16.mxu0 0
  %342 = vmatpush1.bf16.msra.mxu0 0
  %343 = vmatprep.subr.bf16.mxu0 0
  %344 = vmatpush1.bf16.msra.mxu0 0
  %345 = vmatprep.subr.bf16.mxu0 0
  %346 = vmatpush1.bf16.msra.mxu0 0
  %347 = vmatprep.mubr.bf16.mxu0 0
  %348 = vmatmul.mubr.bf16.gmra.mrb[0].mxu0 %v190
  %v349 = vpop.f32.mrb[0].mxu0
  %v350 = vadd.f32 %v55, %v349
  %v351 = vpop.f32.mrb[0].mxu0
  %v352 = vadd.f32 %v55, %v351
  %v353 = vpop.f32.mrb[0].mxu0
  %v354 = vpop.f32.mrb[0].mxu0
  %355 = vdwg.mxu0
  %356 = vmatprep.subr.bf16.mxu0 %v145
  %357 = vmatpush1.bf16.msra.mxu0 %v144
  %358 = vmatprep.subr.bf16.mxu0 %v158
  %359 = vmatpush1.bf16.msra.mxu0 %v157
  %360 = vmatprep.subr.bf16.mxu0 0
  %361 = vmatpush1.bf16.msra.mxu0 0
  %362 = vmatprep.subr.bf16.mxu0 0
  %363 = vmatpush1.bf16.msra.mxu0 0
  %364 = vmatprep.subr.bf16.mxu0 0
  %365 = vmatpush1.bf16.msra.mxu0 0
  %366 = vmatprep.subr.bf16.mxu0 0
  %367 = vmatpush1.bf16.msra.mxu0 0
  %368 = vmatprep.subr.bf16.mxu0 0
  %369 = vmatpush1.bf16.msra.mxu0 0
  %370 = vmatprep.subr.bf16.mxu0 0
  %371 = vmatpush1.bf16.msra.mxu0 0
  %372 = vmatprep.subr.bf16.mxu0 0
  %373 = vmatpush1.bf16.msra.mxu0 0
  %374 = vmatprep.subr.bf16.mxu0 0
  %375 = vmatpush1.bf16.msra.mxu0 0
  %376 = vmatprep.subr.bf16.mxu0 0
  %377 = vmatpush1.bf16.msra.mxu0 0
  %378 = vmatprep.subr.bf16.mxu0 0
  %379 = vmatpush1.bf16.msra.mxu0 0
  %380 = vmatprep.subr.bf16.mxu0 0
  %381 = vmatpush1.bf16.msra.mxu0 0
  %382 = vmatprep.subr.bf16.mxu0 0
  %383 = vmatpush1.bf16.msra.mxu0 0
  %384 = vmatprep.subr.bf16.mxu0 0
  %385 = vmatpush1.bf16.msra.mxu0 0
  %386 = vmatprep.subr.bf16.mxu0 0
  %387 = vmatpush1.bf16.msra.mxu0 0
  %388 = vmatprep.mubr.bf16.mxu0 0
  %389 = vmatmul.mubr.bf16.gmra.mrb[0].mxu0 %v190
  %v390 = vpop.f32.mrb[0].mxu0
  %v391 = vadd.f32 %v55, %v390
  %v392 = vpop.f32.mrb[0].mxu0
  %v393 = vadd.f32 %v55, %v392
  %v394 = vpop.f32.mrb[0].mxu0
  %v395 = vpop.f32.mrb[0].mxu0
  %396 = vdwg.mxu0
  %397 = vmatprep.subr.bf16.mxu0 %v147
  %398 = vmatpush1.bf16.msra.mxu0 %v146
  %399 = vmatprep.subr.bf16.mxu0 %v160
  %400 = vmatpush1.bf16.msra.mxu0 %v159
  %401 = vmatprep.subr.bf16.mxu0 0
  %402 = vmatpush1.bf16.msra.mxu0 0
  %403 = vmatprep.subr.bf16.mxu0 0
  %404 = vmatpush1.bf16.msra.mxu0 0
  %405 = vmatprep.subr.bf16.mxu0 0
  %406 = vmatpush1.bf16.msra.mxu0 0
  %407 = vmatprep.subr.bf16.mxu0 0
  %408 = vmatpush1.bf16.msra.mxu0 0
  %409 = vmatprep.subr.bf16.mxu0 0
  %410 = vmatpush1.bf16.msra.mxu0 0
  %411 = vmatprep.subr.bf16.mxu0 0
  %412 = vmatpush1.bf16.msra.mxu0 0
  %413 = vmatprep.subr.bf16.mxu0 0
  %414 = vmatpush1.bf16.msra.mxu0 0
  %415 = vmatprep.subr.bf16.mxu0 0
  %416 = vmatpush1.bf16.msra.mxu0 0
  %417 = vmatprep.subr.bf16.mxu0 0
  %418 = vmatpush1.bf16.msra.mxu0 0
  %419 = vmatprep.subr.bf16.mxu0 0
  %420 = vmatpush1.bf16.msra.mxu0 0
  %421 = vmatprep.subr.bf16.mxu0 0
  %422 = vmatpush1.bf16.msra.mxu0 0
  %423 = vmatprep.subr.bf16.mxu0 0
  %424 = vmatpush1.bf16.msra.mxu0 0
  %425 = vmatprep.subr.bf16.mxu0 0
  %426 = vmatpush1.bf16.msra.mxu0 0
  %427 = vmatprep.subr.bf16.mxu0 0
  %428 = vmatpush1.bf16.msra.mxu0 0
  %429 = vmatprep.mubr.bf16.mxu0 0
  %430 = vmatmul.mubr.bf16.gmra.mrb[0].mxu0 %v190
  %v431 = vpop.f32.mrb[0].mxu0
  %v432 = vadd.f32 %v55, %v431
  %v433 = vpop.f32.mrb[0].mxu0
  %v434 = vadd.f32 %v55, %v433
  %v435 = vpop.f32.mrb[0].mxu0
  %v436 = vpop.f32.mrb[0].mxu0
  %437 = vdwg.mxu0
  %438 = vmatprep.subr.bf16.mxu0 0
  %439 = vmatpush1.bf16.msra.mxu0 %v148
  %440 = vmatprep.subr.bf16.mxu0 0
  %441 = vmatpush1.bf16.msra.mxu0 %v161
  %442 = vmatprep.subr.bf16.mxu0 0
  %443 = vmatpush1.bf16.msra.mxu0 0
  %444 = vmatprep.subr.bf16.mxu0 0
  %445 = vmatpush1.bf16.msra.mxu0 0
  %446 = vmatprep.subr.bf16.mxu0 0
  %447 = vmatpush1.bf16.msra.mxu0 0
  %448 = vmatprep.subr.bf16.mxu0 0
  %449 = vmatpush1.bf16.msra.mxu0 0
  %450 = vmatprep.subr.bf16.mxu0 0
  %451 = vmatpush1.bf16.msra.mxu0 0
  %452 = vmatprep.subr.bf16.mxu0 0
  %453 = vmatpush1.bf16.msra.mxu0 0
  %454 = vmatprep.subr.bf16.mxu0 0
  %455 = vmatpush1.bf16.msra.mxu0 0
  %456 = vmatprep.subr.bf16.mxu0 0
  %457 = vmatpush1.bf16.msra.mxu0 0
  %458 = vmatprep.subr.bf16.mxu0 0
  %459 = vmatpush1.bf16.msra.mxu0 0
  %460 = vmatprep.subr.bf16.mxu0 0
  %461 = vmatpush1.bf16.msra.mxu0 0
  %462 = vmatprep.subr.bf16.mxu0 0
  %463 = vmatpush1.bf16.msra.mxu0 0
  %464 = vmatprep.subr.bf16.mxu0 0
  %465 = vmatpush1.bf16.msra.mxu0 0
  %466 = vmatprep.subr.bf16.mxu0 0
  %467 = vmatpush1.bf16.msra.mxu0 0
  %468 = vmatprep.subr.bf16.mxu0 0
  %469 = vmatpush1.bf16.msra.mxu0 0
  %470 = vmatprep.mubr.bf16.mxu0 0
  %471 = vmatmul.mubr.bf16.gmra.mrb[0].mxu0 %v190
  %v472 = vpop.f32.mrb[0].mxu0
  %v473 = vadd.f32 %v55, %v472
  %v474 = vpop.f32.mrb[0].mxu0
  %v475 = vpop.f32.mrb[0].mxu0
  %v476 = vpop.f32.mrb[0].mxu0
  %477 = vdwg.mxu0
  %v478 = vtanh.pop %v227
  %v479 = vtanh.pop %v229
  %v480 = vtanh.pop %v268
  %v481 = vtanh.pop %v270
  %v482 = vtanh.pop %v309
  %v483 = vtanh.pop %v311
  %v484 = vtanh.pop %v350
  %v485 = vtanh.pop %v352
  %v486 = vtanh.pop %v391
  %v487 = vtanh.pop %v393
  %v488 = vtanh.pop %v432
  %v489 = vtanh.pop %v434
  %v490 = vtanh.pop %v473
  %v504 = vcombine.low %v478, %v479
  %v505 = vcombine.low %v480, %v481
  %v506 = vcombine.low %v482, %v483
  %v507 = vcombine.low %v484, %v485
  %v509 = vunpack.c.l.s4 1966171168
  %v510 = vunpack.c.0.s8 %v509
  %v511 = vlaneseq
  %v512 = vshrl.u32 %v511, 7
  %v513 = vsub.s32 %v510, %v512
  %v514 = vrot.slane %v504, %v513
  %v516 = vunpack.c.l.s4 1966171168
  %v517 = vunpack.c.0.s8 %v516
  %v518 = vlaneseq
  %v519 = vshrl.u32 %v518, 7
  %v520 = vsub.s32 %v517, %v519
  %v521 = vrot.slane %v505, %v520
  %v523 = vunpack.c.l.s4 1966171168
  %v524 = vunpack.c.0.s8 %v523
  %v525 = vlaneseq
  %v526 = vshrl.u32 %v525, 7
  %v527 = vsub.s32 %v524, %v526
  %v528 = vrot.slane %v506, %v527
  %v530 = vunpack.c.l.s4 1966171168
  %v531 = vunpack.c.0.s8 %v530
  %v532 = vlaneseq
  %v533 = vshrl.u32 %v532, 7
  %v534 = vsub.s32 %v531, %v533
  %v535 = vrot.slane %v507, %v534
  %v536 = vcombine.low %v514, %v521
  %v537 = vcombine.low %v528, %v535
  %v539 = vunpack.c.l.s4 1966171168
  %v540 = vunpack.c.0.s8 %v539
  %v541 = vlaneseq
  %v542 = vshrl.u32 %v541, 7
  %v543 = vsub.s32 %v540, %v542
  %v544 = vrot.slane %v536, %v543
  %v546 = vunpack.c.l.s4 1966171168
  %v547 = vunpack.c.0.s8 %v546
  %v548 = vlaneseq
  %v549 = vshrl.u32 %v548, 7
  %v550 = vsub.s32 %v547, %v549
  %v551 = vrot.slane %v537, %v550
  %v552 = vcombine.low %v544, %v551
  %v553 = vcombine.low %v486, %v487
  %v554 = vcombine.low %v488, %v489
  %v556 = vunpack.c.l.s4 1966171168
  %v557 = vunpack.c.0.s8 %v556
  %v558 = vlaneseq
  %v559 = vshrl.u32 %v558, 7
  %v560 = vsub.s32 %v557, %v559
  %v561 = vrot.slane %v553, %v560
  %v563 = vunpack.c.l.s4 1966171168
  %v564 = vunpack.c.0.s8 %v563
  %v565 = vlaneseq
  %v566 = vshrl.u32 %v565, 7
  %v567 = vsub.s32 %v564, %v566
  %v568 = vrot.slane %v554, %v567
  %v570 = vunpack.c.l.s4 1966171168
  %v571 = vunpack.c.0.s8 %v570
  %v572 = vlaneseq
  %v573 = vshrl.u32 %v572, 7
  %v574 = vsub.s32 %v571, %v573
  %v575 = vrot.slane %v490, %v574
  %v576 = vcombine.low %v561, %v568
  %v578 = vunpack.c.l.s4 1966171168
  %v579 = vunpack.c.0.s8 %v578
  %v580 = vlaneseq
  %v581 = vshrl.u32 %v580, 7
  %v582 = vsub.s32 %v579, %v581
  %v583 = vrot.slane %v576, %v582
  %v585 = vunpack.c.l.s4 1966171168
  %v586 = vunpack.c.0.s8 %v585
  %v587 = vlaneseq
  %v588 = vshrl.u32 %v587, 7
  %v589 = vsub.s32 %v586, %v588
  %v590 = vrot.slane %v575, %v589
  %v591 = vcombine.low %v583, %v590
  %594 = vst [vmem:[%s3] sm:$0xff] %v552
  %v595 = vlaneseq
  %vm596 = vcmp.ge.s32.totalorder %v595, 0
  %vm597 = vcmp.lt.s32.totalorder %v595, 544
  %vm598 = vmand %vm596, %vm597
  %599 = vst.msk [vmem:[%s3 + $0x8] sm:$0x1f] %vm598, %v591
  // Predicated region
  $region14: #{cae_forward.13} parent=0 // pred_check
    _
  $region15: #{cae_forward.13} parent=0 // pred_check_branch
    %601 = sbr.rel (0) target = $region17
  $region16: #{cae_forward.13} parent=0 // pred_region
    _
  $region17: #{cae_forward.13} parent=0 // pred_fallthru
    _
  // Predicated region
  $region18: #{cae_forward.13} parent=0 // pred_check
    _
  $region19: #{cae_forward.13} parent=0 // pred_check_branch
    %603 = sbr.rel (0) target = $region21
  $region20: #{cae_forward.13} parent=0 // pred_region
    _
  $region21: #{cae_forward.13} parent=0 // pred_fallthru
    _

</llo_original>
